<compile_context>
chip_gen: v7x
topology: tpu7x:2x2x1
jax: 0.10.0
libtpu: 0.0.40
codegen_flags: <defaults>
</compile_context>

<pallas_src>
import jax
import jax.numpy as jnp
from jax import lax
from jax.experimental import pallas as pl
from jax.experimental.pallas import tpu as pltpu


def _round_up(v, m):
    return ((v + m - 1) // m) * m


# ---------------------------------------------------------------------------
# Fused ASRNN kernel: input projection + recurrence + fc head per time block.
# ---------------------------------------------------------------------------
def _asrnn_fused_kernel(x_ref, wi2h_ref, whh_ref, wfc_ref, bin_ref, bfc_ref,
                        a_ref, as_ref, rnn_ref, out_ref, u_scr, h_scr, s_scr):
    tb, Bb, Ip = x_ref.shape
    Hp = whh_ref.shape[0]
    Op = out_ref.shape[2]

    # Reset carried state at the first time block of this batch block.
    @pl.when(pl.program_id(1) == 0)
    def _():
        h_scr[...] = jnp.zeros_like(h_scr)
        s_scr[...] = jnp.zeros_like(s_scr)

    # --- 1) fused input projection for the whole time block (no h dep) -----
    xb = x_ref[...].reshape(tb * Bb, Ip)
    u = jnp.dot(xb, wi2h_ref[...],
                preferred_element_type=jnp.float32) + bin_ref[...]
    u_scr[...] = u.reshape(tb, Bb, Hp)

    whh = whh_ref[...]
    a = a_ref[...]      # (1, Hp), implicit broadcast in the step (no (Bb,Hp)
    a_s = as_ref[...]   # materialization -> no extra vreg pressure)

    # --- 2) sequential recurrence over the time block ----------------------
    def step(tt, carry):
        h, s = carry
        pre = u_scr[tt] + jnp.dot(h, whh, preferred_element_type=jnp.float32)
        s_new = a_s * (pre - s) + s
        h_new = a * (jnp.tanh(s_new) - h) + h
        rnn_ref[tt] = h_new
        return h_new, s_new

    h_fin, s_fin = lax.fori_loop(0, tb, step, (h_scr[...], s_scr[...]),
                                 unroll=min(8, tb))
    h_scr[...] = h_fin
    s_scr[...] = s_fin

    # --- 3) fused fc head on the whole time block (lane-dense Op) ----------
    rnn_blk = rnn_ref[...].reshape(tb * Bb, Hp)
    out = jnp.dot(rnn_blk, wfc_ref[...],
                  preferred_element_type=jnp.float32) + bfc_ref[...]
    out_ref[...] = out.reshape(tb, Bb, Op)


# ---------------------------------------------------------------------------
# ASRNN forward
# ---------------------------------------------------------------------------
def asrnn_forward(x, w_i2h, b_i2h, w_h2h, b_h2h, w_fc, b_fc, alpha, alpha_s):
    """x: (T, B, I) float32.  Returns (out (T,B,O), rnn_output (T,B,H))."""
    T, B, I = x.shape
    H = w_i2h.shape[0]
    O = w_fc.shape[0]
    f32 = jnp.float32

    LANE, SUB = 128, 8
    Hp = _round_up(H, LANE)            # lane-dense hidden width
    Op = _round_up(O, LANE)            # lane-dense fc output width
    Ip = _round_up(I, SUB)             # sublane-aligned input width
    Bp = _round_up(B, SUB)             # sublane-dense batch

    # Batch block: whole (tiny) batch in one block, otherwise aim for >= 2
    # blocks (feeds both v7x TensorCores via the 'parallel' axis), capped at
    # 64 rows per block.
    if Bp <= SUB:
        Bb = Bp
    else:
        Bb = min(64, _round_up(-(-Bp // 2), SUB))
        Bp = _round_up(Bp, Bb)

    # Time block: amortize per-grid-step overhead; cap tb*Bb so the
    # double-buffered streamed blocks + u scratch fit default scoped VMEM.
    tb = max(1, min(T, 4096 // Bb, 256))
    Tp = _round_up(T, tb)

    # --- pad parameters; zero padding keeps padded hidden units exactly 0 --
    wi2h_t = jnp.zeros((Ip, Hp), f32).at[:I, :H].set(jnp.asarray(w_i2h, f32).T)
    whh_t = jnp.zeros((Hp, Hp), f32).at[:H, :H].set(jnp.asarray(w_h2h, f32).T)
    wfc_t = jnp.zeros((Hp, Op), f32).at[:H, :O].set(jnp.asarray(w_fc, f32).T)
    b_in = jnp.zeros((1, Hp), f32).at[:, :H].set(
        (jnp.asarray(b_i2h, f32) + jnp.asarray(b_h2h, f32)).reshape(1, H))
    bfc = jnp.zeros((1, Op), f32).at[:, :O].set(
        jnp.asarray(b_fc, f32).reshape(1, O))
    alpha_p = jnp.zeros((1, Hp), f32).at[:, :H].set(
        jnp.asarray(alpha, f32).reshape(1, H))
    alphas_p = jnp.zeros((1, Hp), f32).at[:, :H].set(
        jnp.asarray(alpha_s, f32).reshape(1, H))

    xp = jnp.zeros((Tp, Bp, Ip), f32).at[:T, :B, :I].set(jnp.asarray(x, f32))

    rnn_p, out_p = pl.pallas_call(
        _asrnn_fused_kernel,
        out_shape=(jax.ShapeDtypeStruct((Tp, Bp, Hp), f32),
                   jax.ShapeDtypeStruct((Tp, Bp, Op), f32)),
        grid_spec=pltpu.PrefetchScalarGridSpec(
            num_scalar_prefetch=0,
            grid=(Bp // Bb, Tp // tb),   # (parallel batch blocks, seq. time)
            in_specs=[
                pl.BlockSpec((tb, Bb, Ip), lambda b, t: (t, b, 0)),  # x block
                pl.BlockSpec((Ip, Hp), lambda b, t: (0, 0)),  # W_i2h^T
                pl.BlockSpec((Hp, Hp), lambda b, t: (0, 0)),  # W_h2h^T
                pl.BlockSpec((Hp, Op), lambda b, t: (0, 0)),  # W_fc^T
                pl.BlockSpec((1, Hp), lambda b, t: (0, 0)),   # b_i2h + b_h2h
                pl.BlockSpec((1, Op), lambda b, t: (0, 0)),   # b_fc
                pl.BlockSpec((1, Hp), lambda b, t: (0, 0)),   # alpha
                pl.BlockSpec((1, Hp), lambda b, t: (0, 0)),   # alpha_s
            ],
            out_specs=[
                pl.BlockSpec((tb, Bb, Hp), lambda b, t: (t, b, 0)),  # rnn_out
                pl.BlockSpec((tb, Bb, Op), lambda b, t: (t, b, 0)),  # fc out
            ],
            scratch_shapes=[
                pltpu.VMEM((tb, Bb, Hp), f32),   # u block (fused projection)
                pltpu.VMEM((Bb, Hp), f32),       # hidden state (carried)
                pltpu.VMEM((Bb, Hp), f32),       # synapse state (carried)
            ],
        ),
        compiler_params=pltpu.CompilerParams(
            # time axis is a true recurrence -> arbitrary; batch blocks are
            # independent -> parallel (second TensorCore on v7x).
            dimension_semantics=("parallel", "arbitrary"),
        ),
    )(xp, wi2h_t, whh_t, wfc_t, b_in, bfc, alpha_p, alphas_p)

    return out_p[:T, :B, :O], rnn_p[:T, :B, :H]


# ---------------------------------------------------------------------------
# Pure-JAX reference mirroring the PyTorch ASRNN.forward
# ---------------------------------------------------------------------------
def reference_forward(x, w_i2h, b_i2h, w_h2h, b_h2h, w_fc, b_fc, alpha, alpha_s):
    T, B, _ = x.shape
    H = w_i2h.shape[0]
    h = jnp.zeros((B, H), jnp.float32)
    s = jnp.zeros((B, H), jnp.float32)
    hs = []
    for t in range(T):
        pre = x[t] @ w_i2h.T + b_i2h + h @ w_h2h.T + b_h2h
        s = alpha_s * (pre - s) + s
        h = alpha * (jnp.tanh(s) - h) + h
        hs.append(h)
    rnn_output = jnp.stack(hs, axis=0)
    out = rnn_output @ w_fc.T + b_fc
    return out, rnn_output


if __name__ == "__main__":
    # Small shapes consistent with the module's forward: (seq, batch, input).
    T, B = 8, 2
    input_size, hidden_size, output_size = 4, 32, 3

    key = jax.random.PRNGKey(0)
    ks = jax.random.split(key, 8)
    s_i = 1.0 / jnp.sqrt(input_size)
    s_h = 1.0 / jnp.sqrt(hidden_size)
    w_i2h = jax.random.uniform(ks[0], (hidden_size, input_size), jnp.float32, -s_i, s_i)
    b_i2h = jax.random.uniform(ks[1], (hidden_size,), jnp.float32, -s_i, s_i)
    w_h2h = jax.random.uniform(ks[2], (hidden_size, hidden_size), jnp.float32, -s_h, s_h)
    b_h2h = jax.random.uniform(ks[3], (hidden_size,), jnp.float32, -s_h, s_h)
    w_fc = jax.random.uniform(ks[4], (output_size, hidden_size), jnp.float32, -s_h, s_h)
    b_fc = jax.random.uniform(ks[5], (output_size,), jnp.float32, -s_h, s_h)

    # alpha / alpha_s per ASRNN.__init__: per-unit values drawn from a small
    # set of unique alphas, then sqrt; alpha_s starts as a clone of alpha.
    unique_alphas = jnp.array([0.2, 0.5, 1.0], jnp.float32)
    idx = jax.random.randint(ks[6], (1, hidden_size), 0, unique_alphas.shape[0])
    alpha = jnp.sqrt(unique_alphas[idx]).astype(jnp.float32)   # (1, H)
    alpha_s = alpha                                            # clone at init

    x = jax.random.normal(ks[7], (T, B, input_size), jnp.float32)

    out, rnn_out = asrnn_forward(
        x, w_i2h, b_i2h, w_h2h, b_h2h, w_fc, b_fc, alpha, alpha_s)
    out = jax.block_until_ready(out)
    rnn_out = jax.block_until_ready(rnn_out)

    ref_out, ref_rnn = reference_forward(
        x, w_i2h, b_i2h, w_h2h, b_h2h, w_fc, b_fc, alpha, alpha_s)

    assert out.shape == (T, B, output_size)
    assert rnn_out.shape == (T, B, hidden_size)
    assert jnp.allclose(rnn_out, ref_rnn, atol=1e-4), "rnn_output mismatch"
    assert jnp.allclose(out, ref_out, atol=1e-4), "out mismatch"

    print("KERNEL_OK")
</pallas_src>

<mosaic_0001>
module attributes {stable_mosaic.version = 11 : i64} {
  func.func @_asrnn_fused_kernel(%arg0: i32, %arg1: i32, %arg2: memref<8x8x8xf32, #tpu.memory_space<vmem>>, %arg3: memref<8x128xf32, #tpu.memory_space<vmem>>, %arg4: memref<128x128xf32, #tpu.memory_space<vmem>>, %arg5: memref<128x128xf32, #tpu.memory_space<vmem>>, %arg6: memref<1x128xf32, #tpu.memory_space<vmem>>, %arg7: memref<1x128xf32, #tpu.memory_space<vmem>>, %arg8: memref<1x128xf32, #tpu.memory_space<vmem>>, %arg9: memref<1x128xf32, #tpu.memory_space<vmem>>, %arg10: memref<8x8x128xf32, #tpu.memory_space<vmem>>, %arg11: memref<8x8x128xf32, #tpu.memory_space<vmem>>, %arg12: memref<8x8x128xf32, #tpu.memory_space<vmem>>, %arg13: memref<8x128xf32, #tpu.memory_space<vmem>>, %arg14: memref<8x128xf32, #tpu.memory_space<vmem>>) attributes {dimension_semantics = [#tpu.dimension_semantics<parallel>, #tpu.dimension_semantics<arbitrary>], iteration_bounds = array<i64: 1, 1>, scalar_prefetch = 0 : i64, scratch_operands = 3 : i64, tpu.core_type = #tpu.core_type<tc>, window_params = [{transform_indices = @transform_0, window_bounds = array<i64: 8, 8, 8>}, {pipeline_mode = #tpu.pipeline_mode<synchronous>, transform_indices = @transform_1, window_bounds = array<i64: 8, 128>}, {pipeline_mode = #tpu.pipeline_mode<synchronous>, transform_indices = @transform_2, window_bounds = array<i64: 128, 128>}, {pipeline_mode = #tpu.pipeline_mode<synchronous>, transform_indices = @transform_3, window_bounds = array<i64: 128, 128>}, {pipeline_mode = #tpu.pipeline_mode<synchronous>, transform_indices = @transform_4, window_bounds = array<i64: 1, 128>}, {pipeline_mode = #tpu.pipeline_mode<synchronous>, transform_indices = @transform_5, window_bounds = array<i64: 1, 128>}, {pipeline_mode = #tpu.pipeline_mode<synchronous>, transform_indices = @transform_6, window_bounds = array<i64: 1, 128>}, {pipeline_mode = #tpu.pipeline_mode<synchronous>, transform_indices = @transform_7, window_bounds = array<i64: 1, 128>}, {transform_indices = @transform_8, window_bounds = array<i64: 8, 8, 128>}, {transform_indices = @transform_9, window_bounds = array<i64: 8, 8, 128>}]} {
    %c0_i32 = arith.constant 0 : i32
    %0 = arith.cmpi eq, %arg1, %c0_i32 : i32
    %1 = arith.extui %0 : i1 to i32
    %c0_i32_0 = arith.constant 0 : i32
    %2 = arith.cmpi ne, %1, %c0_i32_0 : i32
    scf.if %2 {
      %cst_76 = arith.constant 0.000000e+00 : f32
      %172 = vector.broadcast %cst_76 : f32 to vector<8x128xf32>
      %c0_77 = arith.constant 0 : index
      %c0_78 = arith.constant 0 : index
      %173 = vector.load %arg13[%c0_77, %c0_78] : memref<8x128xf32, #tpu.memory_space<vmem>>, vector<8x128xf32>
      tpu.vector_store %arg13[%c0_77, %c0_78], %172 {strides = array<i32>} : memref<8x128xf32, #tpu.memory_space<vmem>>, vector<8x128xf32>,
      %cst_79 = arith.constant 0.000000e+00 : f32
      %174 = vector.broadcast %cst_79 : f32 to vector<8x128xf32>
      %c0_80 = arith.constant 0 : index
      %c0_81 = arith.constant 0 : index
      %175 = vector.load %arg14[%c0_80, %c0_81] : memref<8x128xf32, #tpu.memory_space<vmem>>, vector<8x128xf32>
      tpu.vector_store %arg14[%c0_80, %c0_81], %174 {strides = array<i32>} : memref<8x128xf32, #tpu.memory_space<vmem>>, vector<8x128xf32>,
    } else {
    }
    %c0 = arith.constant 0 : index
    %c0_1 = arith.constant 0 : index
    %c0_2 = arith.constant 0 : index
    %3 = vector.load %arg2[%c0, %c0_1, %c0_2] : memref<8x8x8xf32, #tpu.memory_space<vmem>>, vector<8x8x8xf32>
    %4 = vector.shape_cast %3 : vector<8x8x8xf32> to vector<64x8xf32>
    %c0_3 = arith.constant 0 : index
    %c0_4 = arith.constant 0 : index
    %5 = vector.load %arg3[%c0_3, %c0_4] : memref<8x128xf32, #tpu.memory_space<vmem>>, vector<8x128xf32>
    %cst = arith.constant dense<0.000000e+00> : vector<64x128xf32>
    %6 = tpu.matmul %4, %5, %cst {dimension_numbers = #tpu.dot_dimension_numbers<[1], [0], [0], [1], [0, 0, 1, 1], [], []>} : vector<64x8xf32>, vector<8x128xf32>, vector<64x128xf32> -> vector<64x128xf32>
    %c0_5 = arith.constant 0 : index
    %c0_6 = arith.constant 0 : index
    %7 = vector.load %arg6[%c0_5, %c0_6] : memref<1x128xf32, #tpu.memory_space<vmem>>, vector<1x128xf32>
    %8 = vector.broadcast %7 : vector<1x128xf32> to vector<64x128xf32>
    %9 = arith.addf %6, %8 : vector<64x128xf32>
    %10 = vector.shape_cast %9 : vector<64x128xf32> to vector<8x8x128xf32>
    %c0_7 = arith.constant 0 : index
    %c0_8 = arith.constant 0 : index
    %c0_9 = arith.constant 0 : index
    %11 = vector.load %arg12[%c0_7, %c0_8, %c0_9] : memref<8x8x128xf32, #tpu.memory_space<vmem>>, vector<8x8x128xf32>
    tpu.vector_store %arg12[%c0_7, %c0_8, %c0_9], %10 {strides = array<i32>} : memref<8x8x128xf32, #tpu.memory_space<vmem>>, vector<8x8x128xf32>,
    %c0_10 = arith.constant 0 : index
    %c0_11 = arith.constant 0 : index
    %12 = vector.load %arg4[%c0_10, %c0_11] : memref<128x128xf32, #tpu.memory_space<vmem>>, vector<128x128xf32>
    %c0_12 = arith.constant 0 : index
    %c0_13 = arith.constant 0 : index
    %13 = vector.load %arg8[%c0_12, %c0_13] : memref<1x128xf32, #tpu.memory_space<vmem>>, vector<1x128xf32>
    %c0_14 = arith.constant 0 : index
    %c0_15 = arith.constant 0 : index
    %14 = vector.load %arg9[%c0_14, %c0_15] : memref<1x128xf32, #tpu.memory_space<vmem>>, vector<1x128xf32>
    %c0_16 = arith.constant 0 : index
    %c0_17 = arith.constant 0 : index
    %15 = vector.load %arg13[%c0_16, %c0_17] : memref<8x128xf32, #tpu.memory_space<vmem>>, vector<8x128xf32>
    %c0_18 = arith.constant 0 : index
    %c0_19 = arith.constant 0 : index
    %16 = vector.load %arg14[%c0_18, %c0_19] : memref<8x128xf32, #tpu.memory_space<vmem>>, vector<8x128xf32>
    %c0_i32_20 = arith.constant 0 : i32
    %17 = arith.index_cast %c0_i32_20 : i32 to index
    %c0_21 = arith.constant 0 : index
    %c0_22 = arith.constant 0 : index
    %18 = vector.load %arg12[%17, %c0_21, %c0_22] : memref<8x8x128xf32, #tpu.memory_space<vmem>>, vector<1x8x128xf32>
    %19 = vector.shape_cast %18 : vector<1x8x128xf32> to vector<8x128xf32>
    %cst_23 = arith.constant dense<0.000000e+00> : vector<8x128xf32>
    %20 = tpu.matmul %15, %12, %cst_23 {dimension_numbers = #tpu.dot_dimension_numbers<[1], [0], [0], [1], [0, 0, 1, 1], [], []>} : vector<8x128xf32>, vector<128x128xf32>, vector<8x128xf32> -> vector<8x128xf32>
    %21 = arith.addf %19, %20 : vector<8x128xf32>
    %22 = arith.subf %21, %16 : vector<8x128xf32>
    %23 = vector.broadcast %14 : vector<1x128xf32> to vector<8x128xf32>
    %24 = arith.mulf %23, %22 : vector<8x128xf32>
    %25 = arith.addf %24, %16 : vector<8x128xf32>
    %26 = math.tanh %25 : vector<8x128xf32>
    %27 = arith.subf %26, %15 : vector<8x128xf32>
    %28 = vector.broadcast %13 : vector<1x128xf32> to vector<8x128xf32>
    %29 = arith.mulf %28, %27 : vector<8x128xf32>
    %30 = arith.addf %29, %15 : vector<8x128xf32>
    %31 = arith.index_cast %c0_i32_20 : i32 to index
    %c0_24 = arith.constant 0 : index
    %c0_25 = arith.constant 0 : index
    %32 = vector.load %arg10[%31, %c0_24, %c0_25] : memref<8x8x128xf32, #tpu.memory_space<vmem>>, vector<1x8x128xf32>
    %33 = vector.shape_cast %32 : vector<1x8x128xf32> to vector<8x128xf32>
    %34 = vector.shape_cast %30 : vector<8x128xf32> to vector<1x8x128xf32>
    tpu.vector_store %arg10[%31, %c0_24, %c0_25], %34 {strides = array<i32>} : memref<8x8x128xf32, #tpu.memory_space<vmem>>, vector<1x8x128xf32>,
    %c1_i32 = arith.constant 1 : i32
    %35 = arith.index_cast %c1_i32 : i32 to index
    %c0_26 = arith.constant 0 : index
    %c0_27 = arith.constant 0 : index
    %36 = vector.load %arg12[%35, %c0_26, %c0_27] : memref<8x8x128xf32, #tpu.memory_space<vmem>>, vector<1x8x128xf32>
    %37 = vector.shape_cast %36 : vector<1x8x128xf32> to vector<8x128xf32>
    %cst_28 = arith.constant dense<0.000000e+00> : vector<8x128xf32>
    %38 = tpu.matmul %30, %12, %cst_28 {dimension_numbers = #tpu.dot_dimension_numbers<[1], [0], [0], [1], [0, 0, 1, 1], [], []>} : vector<8x128xf32>, vector<128x128xf32>, vector<8x128xf32> -> vector<8x128xf32>
    %39 = arith.addf %37, %38 : vector<8x128xf32>
    %40 = arith.subf %39, %25 : vector<8x128xf32>
    %41 = vector.broadcast %14 : vector<1x128xf32> to vector<8x128xf32>
    %42 = arith.mulf %41, %40 : vector<8x128xf32>
    %43 = arith.addf %42, %25 : vector<8x128xf32>
    %44 = math.tanh %43 : vector<8x128xf32>
    %45 = arith.subf %44, %30 : vector<8x128xf32>
    %46 = vector.broadcast %13 : vector<1x128xf32> to vector<8x128xf32>
    %47 = arith.mulf %46, %45 : vector<8x128xf32>
    %48 = arith.addf %47, %30 : vector<8x128xf32>
    %49 = arith.index_cast %c1_i32 : i32 to index
    %c0_29 = arith.constant 0 : index
    %c0_30 = arith.constant 0 : index
    %50 = vector.load %arg10[%49, %c0_29, %c0_30] : memref<8x8x128xf32, #tpu.memory_space<vmem>>, vector<1x8x128xf32>
    %51 = vector.shape_cast %50 : vector<1x8x128xf32> to vector<8x128xf32>
    %52 = vector.shape_cast %48 : vector<8x128xf32> to vector<1x8x128xf32>
    tpu.vector_store %arg10[%49, %c0_29, %c0_30], %52 {strides = array<i32>} : memref<8x8x128xf32, #tpu.memory_space<vmem>>, vector<1x8x128xf32>,
    %c2_i32 = arith.constant 2 : i32
    %53 = arith.index_cast %c2_i32 : i32 to index
    %c0_31 = arith.constant 0 : index
    %c0_32 = arith.constant 0 : index
    %54 = vector.load %arg12[%53, %c0_31, %c0_32] : memref<8x8x128xf32, #tpu.memory_space<vmem>>, vector<1x8x128xf32>
    %55 = vector.shape_cast %54 : vector<1x8x128xf32> to vector<8x128xf32>
    %cst_33 = arith.constant dense<0.000000e+00> : vector<8x128xf32>
    %56 = tpu.matmul %48, %12, %cst_33 {dimension_numbers = #tpu.dot_dimension_numbers<[1], [0], [0], [1], [0, 0, 1, 1], [], []>} : vector<8x128xf32>, vector<128x128xf32>, vector<8x128xf32> -> vector<8x128xf32>
    %57 = arith.addf %55, %56 : vector<8x128xf32>
    %58 = arith.subf %57, %43 : vector<8x128xf32>
    %59 = vector.broadcast %14 : vector<1x128xf32> to vector<8x128xf32>
    %60 = arith.mulf %59, %58 : vector<8x128xf32>
    %61 = arith.addf %60, %43 : vector<8x128xf32>
    %62 = math.tanh %61 : vector<8x128xf32>
    %63 = arith.subf %62, %48 : vector<8x128xf32>
    %64 = vector.broadcast %13 : vector<1x128xf32> to vector<8x128xf32>
    %65 = arith.mulf %64, %63 : vector<8x128xf32>
    %66 = arith.addf %65, %48 : vector<8x128xf32>
    %67 = arith.index_cast %c2_i32 : i32 to index
    %c0_34 = arith.constant 0 : index
    %c0_35 = arith.constant 0 : index
    %68 = vector.load %arg10[%67, %c0_34, %c0_35] : memref<8x8x128xf32, #tpu.memory_space<vmem>>, vector<1x8x128xf32>
    %69 = vector.shape_cast %68 : vector<1x8x128xf32> to vector<8x128xf32>
    %70 = vector.shape_cast %66 : vector<8x128xf32> to vector<1x8x128xf32>
    tpu.vector_store %arg10[%67, %c0_34, %c0_35], %70 {strides = array<i32>} : memref<8x8x128xf32, #tpu.memory_space<vmem>>, vector<1x8x128xf32>,
    %c3_i32 = arith.constant 3 : i32
    %71 = arith.index_cast %c3_i32 : i32 to index
    %c0_36 = arith.constant 0 : index
    %c0_37 = arith.constant 0 : index
    %72 = vector.load %arg12[%71, %c0_36, %c0_37] : memref<8x8x128xf32, #tpu.memory_space<vmem>>, vector<1x8x128xf32>
    %73 = vector.shape_cast %72 : vector<1x8x128xf32> to vector<8x128xf32>
    %cst_38 = arith.constant dense<0.000000e+00> : vector<8x128xf32>
    %74 = tpu.matmul %66, %12, %cst_38 {dimension_numbers = #tpu.dot_dimension_numbers<[1], [0], [0], [1], [0, 0, 1, 1], [], []>} : vector<8x128xf32>, vector<128x128xf32>, vector<8x128xf32> -> vector<8x128xf32>
    %75 = arith.addf %73, %74 : vector<8x128xf32>
    %76 = arith.subf %75, %61 : vector<8x128xf32>
    %77 = vector.broadcast %14 : vector<1x128xf32> to vector<8x128xf32>
    %78 = arith.mulf %77, %76 : vector<8x128xf32>
    %79 = arith.addf %78, %61 : vector<8x128xf32>
    %80 = math.tanh %79 : vector<8x128xf32>
    %81 = arith.subf %80, %66 : vector<8x128xf32>
    %82 = vector.broadcast %13 : vector<1x128xf32> to vector<8x128xf32>
    %83 = arith.mulf %82, %81 : vector<8x128xf32>
    %84 = arith.addf %83, %66 : vector<8x128xf32>
    %85 = arith.index_cast %c3_i32 : i32 to index
    %c0_39 = arith.constant 0 : index
    %c0_40 = arith.constant 0 : index
    %86 = vector.load %arg10[%85, %c0_39, %c0_40] : memref<8x8x128xf32, #tpu.memory_space<vmem>>, vector<1x8x128xf32>
    %87 = vector.shape_cast %86 : vector<1x8x128xf32> to vector<8x128xf32>
    %88 = vector.shape_cast %84 : vector<8x128xf32> to vector<1x8x128xf32>
    tpu.vector_store %arg10[%85, %c0_39, %c0_40], %88 {strides = array<i32>} : memref<8x8x128xf32, #tpu.memory_space<vmem>>, vector<1x8x128xf32>,
    %c4_i32 = arith.constant 4 : i32
    %89 = arith.index_cast %c4_i32 : i32 to index
    %c0_41 = arith.constant 0 : index
    %c0_42 = arith.constant 0 : index
    %90 = vector.load %arg12[%89, %c0_41, %c0_42] : memref<8x8x128xf32, #tpu.memory_space<vmem>>, vector<1x8x128xf32>
    %91 = vector.shape_cast %90 : vector<1x8x128xf32> to vector<8x128xf32>
    %cst_43 = arith.constant dense<0.000000e+00> : vector<8x128xf32>
    %92 = tpu.matmul %84, %12, %cst_43 {dimension_numbers = #tpu.dot_dimension_numbers<[1], [0], [0], [1], [0, 0, 1, 1], [], []>} : vector<8x128xf32>, vector<128x128xf32>, vector<8x128xf32> -> vector<8x128xf32>
    %93 = arith.addf %91, %92 : vector<8x128xf32>
    %94 = arith.subf %93, %79 : vector<8x128xf32>
    %95 = vector.broadcast %14 : vector<1x128xf32> to vector<8x128xf32>
    %96 = arith.mulf %95, %94 : vector<8x128xf32>
    %97 = arith.addf %96, %79 : vector<8x128xf32>
    %98 = math.tanh %97 : vector<8x128xf32>
    %99 = arith.subf %98, %84 : vector<8x128xf32>
    %100 = vector.broadcast %13 : vector<1x128xf32> to vector<8x128xf32>
    %101 = arith.mulf %100, %99 : vector<8x128xf32>
    %102 = arith.addf %101, %84 : vector<8x128xf32>
    %103 = arith.index_cast %c4_i32 : i32 to index
    %c0_44 = arith.constant 0 : index
    %c0_45 = arith.constant 0 : index
    %104 = vector.load %arg10[%103, %c0_44, %c0_45] : memref<8x8x128xf32, #tpu.memory_space<vmem>>, vector<1x8x128xf32>
    %105 = vector.shape_cast %104 : vector<1x8x128xf32> to vector<8x128xf32>
    %106 = vector.shape_cast %102 : vector<8x128xf32> to vector<1x8x128xf32>
    tpu.vector_store %arg10[%103, %c0_44, %c0_45], %106 {strides = array<i32>} : memref<8x8x128xf32, #tpu.memory_space<vmem>>, vector<1x8x128xf32>,
    %c5_i32 = arith.constant 5 : i32
    %107 = arith.index_cast %c5_i32 : i32 to index
    %c0_46 = arith.constant 0 : index
    %c0_47 = arith.constant 0 : index
    %108 = vector.load %arg12[%107, %c0_46, %c0_47] : memref<8x8x128xf32, #tpu.memory_space<vmem>>, vector<1x8x128xf32>
    %109 = vector.shape_cast %108 : vector<1x8x128xf32> to vector<8x128xf32>
    %cst_48 = arith.constant dense<0.000000e+00> : vector<8x128xf32>
    %110 = tpu.matmul %102, %12, %cst_48 {dimension_numbers = #tpu.dot_dimension_numbers<[1], [0], [0], [1], [0, 0, 1, 1], [], []>} : vector<8x128xf32>, vector<128x128xf32>, vector<8x128xf32> -> vector<8x128xf32>
    %111 = arith.addf %109, %110 : vector<8x128xf32>
    %112 = arith.subf %111, %97 : vector<8x128xf32>
    %113 = vector.broadcast %14 : vector<1x128xf32> to vector<8x128xf32>
    %114 = arith.mulf %113, %112 : vector<8x128xf32>
    %115 = arith.addf %114, %97 : vector<8x128xf32>
    %116 = math.tanh %115 : vector<8x128xf32>
    %117 = arith.subf %116, %102 : vector<8x128xf32>
    %118 = vector.broadcast %13 : vector<1x128xf32> to vector<8x128xf32>
    %119 = arith.mulf %118, %117 : vector<8x128xf32>
    %120 = arith.addf %119, %102 : vector<8x128xf32>
    %121 = arith.index_cast %c5_i32 : i32 to index
    %c0_49 = arith.constant 0 : index
    %c0_50 = arith.constant 0 : index
    %122 = vector.load %arg10[%121, %c0_49, %c0_50] : memref<8x8x128xf32, #tpu.memory_space<vmem>>, vector<1x8x128xf32>
    %123 = vector.shape_cast %122 : vector<1x8x128xf32> to vector<8x128xf32>
    %124 = vector.shape_cast %120 : vector<8x128xf32> to vector<1x8x128xf32>
    tpu.vector_store %arg10[%121, %c0_49, %c0_50], %124 {strides = array<i32>} : memref<8x8x128xf32, #tpu.memory_space<vmem>>, vector<1x8x128xf32>,
    %c6_i32 = arith.constant 6 : i32
    %125 = arith.index_cast %c6_i32 : i32 to index
    %c0_51 = arith.constant 0 : index
    %c0_52 = arith.constant 0 : index
    %126 = vector.load %arg12[%125, %c0_51, %c0_52] : memref<8x8x128xf32, #tpu.memory_space<vmem>>, vector<1x8x128xf32>
    %127 = vector.shape_cast %126 : vector<1x8x128xf32> to vector<8x128xf32>
    %cst_53 = arith.constant dense<0.000000e+00> : vector<8x128xf32>
    %128 = tpu.matmul %120, %12, %cst_53 {dimension_numbers = #tpu.dot_dimension_numbers<[1], [0], [0], [1], [0, 0, 1, 1], [], []>} : vector<8x128xf32>, vector<128x128xf32>, vector<8x128xf32> -> vector<8x128xf32>
    %129 = arith.addf %127, %128 : vector<8x128xf32>
    %130 = arith.subf %129, %115 : vector<8x128xf32>
    %131 = vector.broadcast %14 : vector<1x128xf32> to vector<8x128xf32>
    %132 = arith.mulf %131, %130 : vector<8x128xf32>
    %133 = arith.addf %132, %115 : vector<8x128xf32>
    %134 = math.tanh %133 : vector<8x128xf32>
    %135 = arith.subf %134, %120 : vector<8x128xf32>
    %136 = vector.broadcast %13 : vector<1x128xf32> to vector<8x128xf32>
    %137 = arith.mulf %136, %135 : vector<8x128xf32>
    %138 = arith.addf %137, %120 : vector<8x128xf32>
    %139 = arith.index_cast %c6_i32 : i32 to index
    %c0_54 = arith.constant 0 : index
    %c0_55 = arith.constant 0 : index
    %140 = vector.load %arg10[%139, %c0_54, %c0_55] : memref<8x8x128xf32, #tpu.memory_space<vmem>>, vector<1x8x128xf32>
    %141 = vector.shape_cast %140 : vector<1x8x128xf32> to vector<8x128xf32>
    %142 = vector.shape_cast %138 : vector<8x128xf32> to vector<1x8x128xf32>
    tpu.vector_store %arg10[%139, %c0_54, %c0_55], %142 {strides = array<i32>} : memref<8x8x128xf32, #tpu.memory_space<vmem>>, vector<1x8x128xf32>,
    %c7_i32 = arith.constant 7 : i32
    %143 = arith.index_cast %c7_i32 : i32 to index
    %c0_56 = arith.constant 0 : index
    %c0_57 = arith.constant 0 : index
    %144 = vector.load %arg12[%143, %c0_56, %c0_57] : memref<8x8x128xf32, #tpu.memory_space<vmem>>, vector<1x8x128xf32>
    %145 = vector.shape_cast %144 : vector<1x8x128xf32> to vector<8x128xf32>
    %cst_58 = arith.constant dense<0.000000e+00> : vector<8x128xf32>
    %146 = tpu.matmul %138, %12, %cst_58 {dimension_numbers = #tpu.dot_dimension_numbers<[1], [0], [0], [1], [0, 0, 1, 1], [], []>} : vector<8x128xf32>, vector<128x128xf32>, vector<8x128xf32> -> vector<8x128xf32>
    %147 = arith.addf %145, %146 : vector<8x128xf32>
    %148 = arith.subf %147, %133 : vector<8x128xf32>
    %149 = vector.broadcast %14 : vector<1x128xf32> to vector<8x128xf32>
    %150 = arith.mulf %149, %148 : vector<8x128xf32>
    %151 = arith.addf %150, %133 : vector<8x128xf32>
    %152 = math.tanh %151 : vector<8x128xf32>
    %153 = arith.subf %152, %138 : vector<8x128xf32>
    %154 = vector.broadcast %13 : vector<1x128xf32> to vector<8x128xf32>
    %155 = arith.mulf %154, %153 : vector<8x128xf32>
    %156 = arith.addf %155, %138 : vector<8x128xf32>
    %157 = arith.index_cast %c7_i32 : i32 to index
    %c0_59 = arith.constant 0 : index
    %c0_60 = arith.constant 0 : index
    %158 = vector.load %arg10[%157, %c0_59, %c0_60] : memref<8x8x128xf32, #tpu.memory_space<vmem>>, vector<1x8x128xf32>
    %159 = vector.shape_cast %158 : vector<1x8x128xf32> to vector<8x128xf32>
    %160 = vector.shape_cast %156 : vector<8x128xf32> to vector<1x8x128xf32>
    tpu.vector_store %arg10[%157, %c0_59, %c0_60], %160 {strides = array<i32>} : memref<8x8x128xf32, #tpu.memory_space<vmem>>, vector<1x8x128xf32>,
    %c8_i32 = arith.constant 8 : i32
    %c0_61 = arith.constant 0 : index
    %c0_62 = arith.constant 0 : index
    %161 = vector.load %arg13[%c0_61, %c0_62] : memref<8x128xf32, #tpu.memory_space<vmem>>, vector<8x128xf32>
    tpu.vector_store %arg13[%c0_61, %c0_62], %156 {strides = array<i32>} : memref<8x128xf32, #tpu.memory_space<vmem>>, vector<8x128xf32>,
    %c0_63 = arith.constant 0 : index
    %c0_64 = arith.constant 0 : index
    %162 = vector.load %arg14[%c0_63, %c0_64] : memref<8x128xf32, #tpu.memory_space<vmem>>, vector<8x128xf32>
    tpu.vector_store %arg14[%c0_63, %c0_64], %151 {strides = array<i32>} : memref<8x128xf32, #tpu.memory_space<vmem>>, vector<8x128xf32>,
    %c0_65 = arith.constant 0 : index
    %c0_66 = arith.constant 0 : index
    %c0_67 = arith.constant 0 : index
    %163 = vector.load %arg10[%c0_65, %c0_66, %c0_67] : memref<8x8x128xf32, #tpu.memory_space<vmem>>, vector<8x8x128xf32>
    %164 = vector.shape_cast %163 : vector<8x8x128xf32> to vector<64x128xf32>
    %c0_68 = arith.constant 0 : index
    %c0_69 = arith.constant 0 : index
    %165 = vector.load %arg5[%c0_68, %c0_69] : memref<128x128xf32, #tpu.memory_space<vmem>>, vector<128x128xf32>
    %cst_70 = arith.constant dense<0.000000e+00> : vector<64x128xf32>
    %166 = tpu.matmul %164, %165, %cst_70 {dimension_numbers = #tpu.dot_dimension_numbers<[1], [0], [0], [1], [0, 0, 1, 1], [], []>} : vector<64x128xf32>, vector<128x128xf32>, vector<64x128xf32> -> vector<64x128xf32>
    %c0_71 = arith.constant 0 : index
    %c0_72 = arith.constant 0 : index
    %167 = vector.load %arg7[%c0_71, %c0_72] : memref<1x128xf32, #tpu.memory_space<vmem>>, vector<1x128xf32>
    %168 = vector.broadcast %167 : vector<1x128xf32> to vector<64x128xf32>
    %169 = arith.addf %166, %168 : vector<64x128xf32>
    %170 = vector.shape_cast %169 : vector<64x128xf32> to vector<8x8x128xf32>
    %c0_73 = arith.constant 0 : index
    %c0_74 = arith.constant 0 : index
    %c0_75 = arith.constant 0 : index
    %171 = vector.load %arg11[%c0_73, %c0_74, %c0_75] : memref<8x8x128xf32, #tpu.memory_space<vmem>>, vector<8x8x128xf32>
    tpu.vector_store %arg11[%c0_73, %c0_74, %c0_75], %170 {strides = array<i32>} : memref<8x8x128xf32, #tpu.memory_space<vmem>>, vector<8x8x128xf32>,
    return
  }
  func.func @transform_0(%arg0: i32, %arg1: i32) -> (i32, i32, i32) {
    %c0_i32 = arith.constant 0 : i32
    %c0_i32_0 = arith.constant 0 : i32
    return %arg1, %arg0, %c0_i32 : i32, i32, i32
  }
  func.func @transform_1(%arg0: i32, %arg1: i32) -> (i32, i32) {
    %c0_i32 = arith.constant 0 : i32
    %c0_i32_0 = arith.constant 0 : i32
    %c0_i32_1 = arith.constant 0 : i32
    return %c0_i32, %c0_i32_0 : i32, i32
  }
  func.func @transform_2(%arg0: i32, %arg1: i32) -> (i32, i32) {
    %c0_i32 = arith.constant 0 : i32
    %c0_i32_0 = arith.constant 0 : i32
    %c0_i32_1 = arith.constant 0 : i32
    return %c0_i32, %c0_i32_0 : i32, i32
  }
  func.func @transform_3(%arg0: i32, %arg1: i32) -> (i32, i32) {
    %c0_i32 = arith.constant 0 : i32
    %c0_i32_0 = arith.constant 0 : i32
    %c0_i32_1 = arith.constant 0 : i32
    return %c0_i32, %c0_i32_0 : i32, i32
  }
  func.func @transform_4(%arg0: i32, %arg1: i32) -> (i32, i32) {
    %c0_i32 = arith.constant 0 : i32
    %c0_i32_0 = arith.constant 0 : i32
    %c0_i32_1 = arith.constant 0 : i32
    return %c0_i32, %c0_i32_0 : i32, i32
  }
  func.func @transform_5(%arg0: i32, %arg1: i32) -> (i32, i32) {
    %c0_i32 = arith.constant 0 : i32
    %c0_i32_0 = arith.constant 0 : i32
    %c0_i32_1 = arith.constant 0 : i32
    return %c0_i32, %c0_i32_0 : i32, i32
  }
  func.func @transform_6(%arg0: i32, %arg1: i32) -> (i32, i32) {
    %c0_i32 = arith.constant 0 : i32
    %c0_i32_0 = arith.constant 0 : i32
    %c0_i32_1 = arith.constant 0 : i32
    return %c0_i32, %c0_i32_0 : i32, i32
  }
  func.func @transform_7(%arg0: i32, %arg1: i32) -> (i32, i32) {
    %c0_i32 = arith.constant 0 : i32
    %c0_i32_0 = arith.constant 0 : i32
    %c0_i32_1 = arith.constant 0 : i32
    return %c0_i32, %c0_i32_0 : i32, i32
  }
  func.func @transform_8(%arg0: i32, %arg1: i32) -> (i32, i32, i32) {
    %c0_i32 = arith.constant 0 : i32
    %c0_i32_0 = arith.constant 0 : i32
    return %arg1, %arg0, %c0_i32 : i32, i32, i32
  }
  func.func @transform_9(%arg0: i32, %arg1: i32) -> (i32, i32, i32) {
    %c0_i32 = arith.constant 0 : i32
    %c0_i32_0 = arith.constant 0 : i32
    return %arg1, %arg0, %c0_i32 : i32, i32, i32
  }
}

</mosaic_0001>

<llo_original>
// kernel: tpu_custom_call.1
$region0: #{tpu_custom_call.1}
  #allocation0 [shape = 'u32[]', space=smem, size = 0x4, offset = 0x4, fixed_abs, tag = 'smem constant byte address 0x4 - core index']
  #allocation1 [shape = 'u32[144,128]{1,0:T(1,128)}', space=vmem, size = 0x12000, scoped, tag = 'internal scratch']
  #allocation2 [shape = 'f32[8,8,128]{2,1,0:T(8,128)}', space=vmem, size = 0x8000, scoped, tag = 'scratch operand']
  #allocation3 [shape = 'f32[8,128]{1,0:T(8,128)}', space=vmem, size = 0x1000, scoped, tag = 'scratch operand']
  #allocation4 [shape = 'f32[8,128]{1,0:T(8,128)}', space=vmem, size = 0x1000, scoped, tag = 'scratch operand']
  %s0 = inlined_call_operand.hbm [shape: f32[8,8,8], index: 0, kind: input, shape index: {}]
  %s1 = inlined_call_operand.hbm [shape: f32[8,128], index: 1, kind: input, shape index: {}]
  %s2 = inlined_call_operand.hbm [shape: f32[128,128], index: 2, kind: input, shape index: {}]
  %s3 = inlined_call_operand.hbm [shape: f32[128,128], index: 3, kind: input, shape index: {}]
  %s4 = inlined_call_operand.vmem [shape: f32[1,128], index: 4, kind: input, shape index: {}]
  %s5 = inlined_call_operand.vmem [shape: f32[1,128], index: 5, kind: input, shape index: {}]
  %s6 = inlined_call_operand.vmem [shape: f32[1,128], index: 6, kind: input, shape index: {}]
  %s7 = inlined_call_operand.vmem [shape: f32[1,128], index: 7, kind: input, shape index: {}]
  %s8 = inlined_call_operand.hbm [shape: f32[8,8,128], index: 8, kind: output, shape index: {0}]
  %s9 = inlined_call_operand.hbm [shape: f32[8,8,128], index: 9, kind: output, shape index: {1}]
  %10 = xla_tuple %s8, %s9
  %s11 = sld [smem:[#allocation0]]
  $region70: #{tpu_custom_call.1} parent=0
    _
  %s13 = ssub.s32 1, %s11
  %s14 = scalar_select 0, %s13, %s11
  $region1: #{tpu_custom_call.1} parent=0
    #allocation5 [shape = 'u8[32768]{0}', space=vmem, size = 0x8000, scoped, tag = 'input window, operand 0, single buffered']
    #allocation6 [shape = 's32[1]{0}', space=sflag, size = 0x4, scoped, tag = 'scoped memory for tpu_custom_call.1']
    #allocation7 [shape = 's32[1]{0}', space=sflag, size = 0x4, scoped, tag = 'scoped memory for tpu_custom_call.1']
    #allocation8 [shape = 'u8[4096]{0}', space=vmem, size = 0x1000, scoped, tag = 'input window, operand 1, single buffered']
    #allocation9 [shape = 's32[1]{0}', space=sflag, size = 0x4, scoped, tag = 'scoped memory for tpu_custom_call.1']
    #allocation10 [shape = 'u8[65536]{0}', space=vmem, size = 0x10000, scoped, tag = 'input window, operand 2, single buffered']
    #allocation11 [shape = 'u8[65536]{0}', space=vmem, size = 0x10000, scoped, tag = 'input window, operand 3, single buffered']
    #allocation12 [shape = 's32[1]{0}', space=sflag, size = 0x4, scoped, tag = 'scoped memory for tpu_custom_call.1']
    #allocation13 [shape = 'u8[32768]{0}', space=vmem, size = 0x8000, scoped, tag = 'output window, operand 0, single buffered']
    #allocation14 [shape = 'u8[32768]{0}', space=vmem, size = 0x8000, scoped, tag = 'output window, operand 1, single buffered']
    #allocation15 [shape = 's32[1]{0}', space=sflag, size = 0x4, scoped, tag = 'scoped memory for tpu_custom_call.1']
    %15 = vsyncpa [#allocation6], 0
    %16 = vsyncpa [#allocation9], 0
    %17 = vsyncpa [#allocation12], 0
    %18 = vsyncpa [#allocation7], 0
    %19 = vsyncpa [#allocation15], 0
    // Predicated region
    $region2: #{tpu_custom_call.1} parent=1 // pred_check
      _
    $region3: #{tpu_custom_call.1} parent=1 // pred_check_branch
      %21 = sbr.rel (0) target = $region5
    $region4: #{tpu_custom_call.1} parent=1 // pred_region
      %s23 = ssub.s32 1024, 1024
      %24 = vsyncadd [#allocation6], %s23
      %s25 = sshll.u32 [#allocation5], 4
      %s26 = int_to_ptr.vmem [resolvable:$true] %s25
      %31 = dma.hbm_to_vmem [thread:$0]  %s0, 1024, %s26, [#allocation6], 128, 128, 8
    $region5: #{tpu_custom_call.1} parent=1 // pred_fallthru
      _
    // Predicated region
    $region6: #{tpu_custom_call.1} parent=1 // pred_check
      _
    $region7: #{tpu_custom_call.1} parent=1 // pred_check_branch
      %33 = sbr.rel (0) target = $region9
    $region8: #{tpu_custom_call.1} parent=1 // pred_region
      %s35 = ssub.s32 128, 128
      %36 = vsyncadd [#allocation9], %s35
      %s38 = sshll.u32 [#allocation8], 4
      %s39 = int_to_ptr.vmem [resolvable:$true] %s38
      %41 = dma.hbm_to_vmem [thread:$0]  %s1, 128, %s39, [#allocation9]
    $region9: #{tpu_custom_call.1} parent=1 // pred_fallthru
      _
    // Predicated region
    $region10: #{tpu_custom_call.1} parent=1 // pred_check
      _
    $region11: #{tpu_custom_call.1} parent=1 // pred_check_branch
      %43 = sbr.rel (0) target = $region13
    $region12: #{tpu_custom_call.1} parent=1 // pred_region
      %s45 = ssub.s32 2048, 2048
      %46 = vsyncadd [#allocation9], %s45
      %s47 = sshll.u32 [#allocation10], 4
      %s48 = int_to_ptr.vmem [resolvable:$true] %s47
      %53 = dma.hbm_to_vmem [thread:$0]  %s2, 2048, %s48, [#allocation9], 128, 128, 8
    $region13: #{tpu_custom_call.1} parent=1 // pred_fallthru
      _
    // Predicated region
    $region14: #{tpu_custom_call.1} parent=1 // pred_check
      _
    $region15: #{tpu_custom_call.1} parent=1 // pred_check_branch
      %55 = sbr.rel (0) target = $region17
    $region16: #{tpu_custom_call.1} parent=1 // pred_region
      %s57 = ssub.s32 2048, 2048
      %58 = vsyncadd [#allocation12], %s57
      %s59 = sshll.u32 [#allocation11], 4
      %s60 = int_to_ptr.vmem [resolvable:$true] %s59
      %65 = dma.hbm_to_vmem [thread:$0]  %s3, 2048, %s60, [#allocation12], 128, 128, 8
    $region17: #{tpu_custom_call.1} parent=1 // pred_fallthru
      _
    // Predicated region
    $region18: #{tpu_custom_call.1} parent=1 // pred_check
      _
    $region19: #{tpu_custom_call.1} parent=1 // pred_check_branch
      %67 = sbr.rel (0) target = $region21
    $region20: #{tpu_custom_call.1} parent=1 // pred_region
      _
    $region21: #{tpu_custom_call.1} parent=1 // pred_fallthru
      _
    // Predicated region
    $region22: #{tpu_custom_call.1} parent=1 // pred_check
      _
    $region23: #{tpu_custom_call.1} parent=1 // pred_check_branch
      %69 = sbr.rel (0) target = $region25
    $region24: #{tpu_custom_call.1} parent=1 // pred_region
      _
    $region25: #{tpu_custom_call.1} parent=1 // pred_fallthru
      _
    // Predicated region
    $region26: #{tpu_custom_call.1} parent=1 // pred_check
      _
    $region27: #{tpu_custom_call.1} parent=1 // pred_check_branch
      %71 = sbr.rel (0) target = $region29
    $region28: #{tpu_custom_call.1} parent=1 // pred_region
      _
    $region29: #{tpu_custom_call.1} parent=1 // pred_fallthru
      _
    // Predicated region
    $region30: #{tpu_custom_call.1} parent=1 // pred_check
      _
    $region31: #{tpu_custom_call.1} parent=1 // pred_check_branch
      %73 = sbr.rel (0) target = $region33
    $region32: #{tpu_custom_call.1} parent=1 // pred_region
      _
    $region33: #{tpu_custom_call.1} parent=1 // pred_fallthru
      _
    // Predicated region
    $region34: #{tpu_custom_call.1} parent=1 // pred_check
      _
    $region35: #{tpu_custom_call.1} parent=1 // pred_check_branch
      %75 = sbr.rel (0) target = $region37
    $region36: #{tpu_custom_call.1} parent=1 // pred_region
      %76 = dma.done [#allocation6], 1024
    $region37: #{tpu_custom_call.1} parent=1 // pred_fallthru
      _
    // Predicated region
    $region38: #{tpu_custom_call.1} parent=1 // pred_check
      _
    $region39: #{tpu_custom_call.1} parent=1 // pred_check_branch
      %78 = sbr.rel (0) target = $region41
    $region40: #{tpu_custom_call.1} parent=1 // pred_region
      %79 = dma.done [#allocation9], 128
    $region41: #{tpu_custom_call.1} parent=1 // pred_fallthru
      _
    // Predicated region
    $region42: #{tpu_custom_call.1} parent=1 // pred_check
      _
    $region43: #{tpu_custom_call.1} parent=1 // pred_check_branch
      %81 = sbr.rel (0) target = $region45
    $region44: #{tpu_custom_call.1} parent=1 // pred_region
      %82 = dma.done [#allocation9], 2048
    $region45: #{tpu_custom_call.1} parent=1 // pred_fallthru
      _
    // Predicated region
    $region46: #{tpu_custom_call.1} parent=1 // pred_check
      _
    $region47: #{tpu_custom_call.1} parent=1 // pred_check_branch
      %84 = sbr.rel (0) target = $region49
    $region48: #{tpu_custom_call.1} parent=1 // pred_region
      %85 = dma.done [#allocation12], 2048
    $region49: #{tpu_custom_call.1} parent=1 // pred_fallthru
      _
    %p86 = scmp.eq.s32.totalorder 0, 0
    // Predicated region
    $region50: #{tpu_custom_call.1} parent=1 // pred_check
      %p87 = pneg %p86
    $region51: #{tpu_custom_call.1} parent=1 // pred_check_branch
      %89 = sbr.rel (%p87) target = $region53
    $region52: #{tpu_custom_call.1} parent=1 // pred_region
      %90 = vst [vmem:[#allocation3] sm:$0xff] 0.0
      %91 = vst [vmem:[#allocation4] sm:$0xff] 0.0
    $region53: #{tpu_custom_call.1} parent=1 // pred_fallthru
      _
    %v92 = vld [vmem:[#allocation5] sm:$0xff]
    %v93 = vld [vmem:[#allocation5 + $0x8] sm:$0xff]
    %v94 = vld [vmem:[#allocation5 + $0x10] sm:$0xff]
    %v95 = vld [vmem:[#allocation5 + $0x18] sm:$0xff]
    %v96 = vld [vmem:[#allocation5 + $0x20] sm:$0xff]
    %v97 = vld [vmem:[#allocation5 + $0x28] sm:$0xff]
    %v98 = vld [vmem:[#allocation5 + $0x30] sm:$0xff]
    %v99 = vld [vmem:[#allocation5 + $0x38] sm:$0xff]
    %v100 = vld [vmem:[#allocation8] sm:$0xff]
    %v101 = vld [vmem:[%s4] sm:$0x1]
    %v103 = vlaneseq
    %v104 = vshrl.u32 %v103, 7
    %v105 = vsub.s32 0, %v104
    %v106 = vrot.slane %v101, %v105
    %vm108 = vcmask 64512
    %v110 = vsel %vm108, %v92, 0
    %v113 = vsel %vm108, %v93, 0
    %v116 = vsel %vm108, %v94, 0
    %v119 = vsel %vm108, %v95, 0
    %v122 = vsel %vm108, %v96, 0
    %v125 = vsel %vm108, %v97, 0
    %v128 = vsel %vm108, %v98, 0
    %v131 = vsel %vm108, %v99, 0
    %133 = vmatprep.subr.mxu0 0.0
    %134 = vmatpush1.msra.mxu0 %v100
    %135 = vmatprep.subr.mxu0 0.0
    %136 = vmatpush1.msra.mxu0 0.0
    %137 = vmatprep.subr.mxu0 0.0
    %138 = vmatpush1.msra.mxu0 0.0
    %139 = vmatprep.subr.mxu0 0.0
    %140 = vmatpush1.msra.mxu0 0.0
    %141 = vmatprep.subr.mxu0 0.0
    %142 = vmatpush1.msra.mxu0 0.0
    %143 = vmatprep.subr.mxu0 0.0
    %144 = vmatpush1.msra.mxu0 0.0
    %145 = vmatprep.subr.mxu0 0.0
    %146 = vmatpush1.msra.mxu0 0.0
    %147 = vmatprep.subr.mxu0 0.0
    %148 = vmatpush1.msra.mxu0 0.0
    %149 = vmatprep.subr.mxu0 0.0
    %150 = vmatpush1.msra.mxu0 0.0
    %151 = vmatprep.subr.mxu0 0.0
    %152 = vmatpush1.msra.mxu0 0.0
    %153 = vmatprep.subr.mxu0 0.0
    %154 = vmatpush1.msra.mxu0 0.0
    %155 = vmatprep.subr.mxu0 0.0
    %156 = vmatpush1.msra.mxu0 0.0
    %157 = vmatprep.subr.mxu0 0.0
    %158 = vmatpush1.msra.mxu0 0.0
    %159 = vmatprep.subr.mxu0 0.0
    %160 = vmatpush1.msra.mxu0 0.0
    %161 = vmatprep.subr.mxu0 0.0
    %162 = vmatpush1.msra.mxu0 0.0
    %163 = vmatprep.subr.mxu0 0.0
    %164 = vmatpush1.msra.mxu0 0.0
    %165 = vmatprep.subr.mxu0 0.0
    %166 = vmatpush1.msra.mxu0 0.0
    %167 = vmatprep.subr.mxu0 0.0
    %168 = vmatpush1.msra.mxu0 0.0
    %169 = vmatprep.subr.mxu0 0.0
    %170 = vmatpush1.msra.mxu0 0.0
    %171 = vmatprep.subr.mxu0 0.0
    %172 = vmatpush1.msra.mxu0 0.0
    %173 = vmatprep.subr.mxu0 0.0
    %174 = vmatpush1.msra.mxu0 0.0
    %175 = vmatprep.subr.mxu0 0.0
    %176 = vmatpush1.msra.mxu0 0.0
    %177 = vmatprep.subr.mxu0 0.0
    %178 = vmatpush1.msra.mxu0 0.0
    %179 = vmatprep.subr.mxu0 0.0
    %180 = vmatpush1.msra.mxu0 0.0
    %181 = vmatprep.subr.mxu0 0.0
    %182 = vmatpush1.msra.mxu0 0.0
    %183 = vmatprep.subr.mxu0 0.0
    %184 = vmatpush1.msra.mxu0 0.0
    %185 = vmatprep.subr.mxu0 0.0
    %186 = vmatpush1.msra.mxu0 0.0
    %187 = vmatprep.subr.mxu0 0.0
    %188 = vmatpush1.msra.mxu0 0.0
    %189 = vmatprep.subr.mxu0 0.0
    %190 = vmatpush1.msra.mxu0 0.0
    %191 = vmatprep.subr.mxu0 0.0
    %192 = vmatpush1.msra.mxu0 0.0
    %193 = vmatprep.subr.mxu0 0.0
    %194 = vmatpush1.msra.mxu0 0.0
    %195 = vmatprep.subr.mxu0 0.0
    %196 = vmatpush1.msra.mxu0 0.0
    %197 = vmatprep.mubr.f32.mxu0 0.0
    %198 = vmatmul.mubr.f32.gmra.mrb[0].mxu0 %v110
    %v199 = vpop.f32.mrb[0].mxu0
    %v200 = vadd.f32 %v106, %v199
    %v201 = vpop.f32.mrb[0].mxu0
    %202 = vmatprep.mubr.f32.mxu0 0.0
    %203 = vmatmul.mubr.f32.gmra.mrb[0].mxu0 %v113
    %v204 = vpop.f32.mrb[0].mxu0
    %v205 = vadd.f32 %v106, %v204
    %v206 = vpop.f32.mrb[0].mxu0
    %207 = vmatprep.mubr.f32.mxu0 0.0
    %208 = vmatmul.mubr.f32.gmra.mrb[0].mxu0 %v116
    %v209 = vpop.f32.mrb[0].mxu0
    %v210 = vadd.f32 %v106, %v209
    %v211 = vpop.f32.mrb[0].mxu0
    %212 = vmatprep.mubr.f32.mxu0 0.0
    %213 = vmatmul.mubr.f32.gmra.mrb[0].mxu0 %v119
    %v214 = vpop.f32.mrb[0].mxu0
    %v215 = vadd.f32 %v106, %v214
    %v216 = vpop.f32.mrb[0].mxu0
    %217 = vmatprep.mubr.f32.mxu0 0.0
    %218 = vmatmul.mubr.f32.gmra.mrb[0].mxu0 %v122
    %v219 = vpop.f32.mrb[0].mxu0
    %v220 = vadd.f32 %v106, %v219
    %v221 = vpop.f32.mrb[0].mxu0
    %222 = vmatprep.mubr.f32.mxu0 0.0
    %223 = vmatmul.mubr.f32.gmra.mrb[0].mxu0 %v125
    %v224 = vpop.f32.mrb[0].mxu0
    %v225 = vadd.f32 %v106, %v224
    %v226 = vpop.f32.mrb[0].mxu0
    %227 = vmatprep.mubr.f32.mxu0 0.0
    %228 = vmatmul.mubr.f32.gmra.mrb[0].mxu0 %v128
    %v229 = vpop.f32.mrb[0].mxu0
    %v230 = vadd.f32 %v106, %v229
    %v231 = vpop.f32.mrb[0].mxu0
    %232 = vmatprep.mubr.f32.mxu0 0.0
    %233 = vmatmul.mubr.f32.gmra.mrb[0].mxu0 %v131
    %v234 = vpop.f32.mrb[0].mxu0
    %v235 = vadd.f32 %v106, %v234
    %v236 = vpop.f32.mrb[0].mxu0
    %237 = vdwg.mxu0
    %238 = vst [vmem:[#allocation2] sm:$0xff] %v200
    %239 = vst [vmem:[#allocation2 + $0x8] sm:$0xff] %v205
    %240 = vst [vmem:[#allocation2 + $0x10] sm:$0xff] %v210
    %241 = vst [vmem:[#allocation2 + $0x18] sm:$0xff] %v215
    %242 = vst [vmem:[#allocation2 + $0x20] sm:$0xff] %v220
    %243 = vst [vmem:[#allocation2 + $0x28] sm:$0xff] %v225
    %244 = vst [vmem:[#allocation2 + $0x30] sm:$0xff] %v230
    %245 = vst [vmem:[#allocation2 + $0x38] sm:$0xff] %v235
    %v246 = vld [vmem:[#allocation10] sm:$0xff]
    %v247 = vld [vmem:[#allocation10 + $0x8] sm:$0xff]
    %v248 = vld [vmem:[#allocation10 + $0x10] sm:$0xff]
    %v249 = vld [vmem:[#allocation10 + $0x18] sm:$0xff]
    %v250 = vld [vmem:[#allocation10 + $0x20] sm:$0xff]
    %v251 = vld [vmem:[#allocation10 + $0x28] sm:$0xff]
    %v252 = vld [vmem:[#allocation10 + $0x30] sm:$0xff]
    %v253 = vld [vmem:[#allocation10 + $0x38] sm:$0xff]
    %v254 = vld [vmem:[#allocation10 + $0x40] sm:$0xff]
    %v255 = vld [vmem:[#allocation10 + $0x48] sm:$0xff]
    %v256 = vld [vmem:[#allocation10 + $0x50] sm:$0xff]
    %v257 = vld [vmem:[#allocation10 + $0x58] sm:$0xff]
    %v258 = vld [vmem:[#allocation10 + $0x60] sm:$0xff]
    %v259 = vld [vmem:[#allocation10 + $0x68] sm:$0xff]
    %v260 = vld [vmem:[#allocation10 + $0x70] sm:$0xff]
    %v261 = vld [vmem:[#allocation10 + $0x78] sm:$0xff]
    %v262 = vld [vmem:[%s6] sm:$0x1]
    %v263 = vld [vmem:[%s7] sm:$0x1]
    %v264 = vld [vmem:[#allocation3] sm:$0xff]
    %v265 = vld [vmem:[#allocation4] sm:$0xff]
    %v266 = vld [vmem:[#allocation2] sm:$0xff]
    %267 = vmatprep.subr.mxu0 0.0
    %268 = vmatpush1.msra.mxu0 %v246
    %269 = vmatprep.subr.mxu0 0.0
    %270 = vmatpush1.msra.mxu0 %v247
    %271 = vmatprep.subr.mxu0 0.0
    %272 = vmatpush1.msra.mxu0 %v248
    %273 = vmatprep.subr.mxu0 0.0
    %274 = vmatpush1.msra.mxu0 %v249
    %275 = vmatprep.subr.mxu0 0.0
    %276 = vmatpush1.msra.mxu0 %v250
    %277 = vmatprep.subr.mxu0 0.0
    %278 = vmatpush1.msra.mxu0 %v251
    %279 = vmatprep.subr.mxu0 0.0
    %280 = vmatpush1.msra.mxu0 %v252
    %281 = vmatprep.subr.mxu0 0.0
    %282 = vmatpush1.msra.mxu0 %v253
    %283 = vmatprep.subr.mxu0 0.0
    %284 = vmatpush1.msra.mxu0 %v254
    %285 = vmatprep.subr.mxu0 0.0
    %286 = vmatpush1.msra.mxu0 %v255
    %287 = vmatprep.subr.mxu0 0.0
    %288 = vmatpush1.msra.mxu0 %v256
    %289 = vmatprep.subr.mxu0 0.0
    %290 = vmatpush1.msra.mxu0 %v257
    %291 = vmatprep.subr.mxu0 0.0
    %292 = vmatpush1.msra.mxu0 %v258
    %293 = vmatprep.subr.mxu0 0.0
    %294 = vmatpush1.msra.mxu0 %v259
    %295 = vmatprep.subr.mxu0 0.0
    %296 = vmatpush1.msra.mxu0 %v260
    %297 = vmatprep.subr.mxu0 0.0
    %298 = vmatpush1.msra.mxu0 %v261
    %299 = vmatprep.subr.mxu0 0.0
    %300 = vmatpush1.msra.mxu0 0.0
    %301 = vmatprep.subr.mxu0 0.0
    %302 = vmatpush1.msra.mxu0 0.0
    %303 = vmatprep.subr.mxu0 0.0
    %304 = vmatpush1.msra.mxu0 0.0
    %305 = vmatprep.subr.mxu0 0.0
    %306 = vmatpush1.msra.mxu0 0.0
    %307 = vmatprep.subr.mxu0 0.0
    %308 = vmatpush1.msra.mxu0 0.0
    %309 = vmatprep.subr.mxu0 0.0
    %310 = vmatpush1.msra.mxu0 0.0
    %311 = vmatprep.subr.mxu0 0.0
    %312 = vmatpush1.msra.mxu0 0.0
    %313 = vmatprep.subr.mxu0 0.0
    %314 = vmatpush1.msra.mxu0 0.0
    %315 = vmatprep.subr.mxu0 0.0
    %316 = vmatpush1.msra.mxu0 0.0
    %317 = vmatprep.subr.mxu0 0.0
    %318 = vmatpush1.msra.mxu0 0.0
    %319 = vmatprep.subr.mxu0 0.0
    %320 = vmatpush1.msra.mxu0 0.0
    %321 = vmatprep.subr.mxu0 0.0
    %322 = vmatpush1.msra.mxu0 0.0
    %323 = vmatprep.subr.mxu0 0.0
    %324 = vmatpush1.msra.mxu0 0.0
    %325 = vmatprep.subr.mxu0 0.0
    %326 = vmatpush1.msra.mxu0 0.0
    %327 = vmatprep.subr.mxu0 0.0
    %328 = vmatpush1.msra.mxu0 0.0
    %329 = vmatprep.subr.mxu0 0.0
    %330 = vmatpush1.msra.mxu0 0.0
    %331 = vmatprep.mubr.f32.mxu0 0.0
    %332 = vmatmul.mubr.f32.gmra.mrb[0].mxu0 %v264
    %v333 = vpop.f32.mrb[0].mxu0
    %v334 = vadd.f32 0.0, %v333
    %v335 = vpop.f32.mrb[0].mxu0
    %336 = vdwg.mxu0
    %v337 = vadd.f32 %v266, %v334
    %v338 = vsub.f32 %v337, %v265
    %v340 = vlaneseq
    %v341 = vshrl.u32 %v340, 7
    %v342 = vsub.s32 0, %v341
    %v343 = vrot.slane %v263, %v342
    %v345 = vmul.f32 %v343, %v338
    %v346 = vadd.f32 %v345, %v265
    %v347 = vtanh.pop %v346
    %v348 = vsub.f32 %v347, %v264
    %v350 = vlaneseq
    %v351 = vshrl.u32 %v350, 7
    %v352 = vsub.s32 0, %v351
    %v353 = vrot.slane %v262, %v352
    %v355 = vmul.f32 %v353, %v348
    %v356 = vadd.f32 %v355, %v264
    %357 = vst [vmem:[#allocation13] sm:$0xff] %v356
    %s358 = scalar_lea.vmem [#allocation2], 8
    %v359 = vld [vmem:[%s358] sm:$0xff]
    %360 = vmatprep.subr.mxu0 0.0
    %361 = vmatpush1.msra.mxu0 %v246
    %362 = vmatprep.subr.mxu0 0.0
    %363 = vmatpush1.msra.mxu0 %v247
    %364 = vmatprep.subr.mxu0 0.0
    %365 = vmatpush1.msra.mxu0 %v248
    %366 = vmatprep.subr.mxu0 0.0
    %367 = vmatpush1.msra.mxu0 %v249
    %368 = vmatprep.subr.mxu0 0.0
    %369 = vmatpush1.msra.mxu0 %v250
    %370 = vmatprep.subr.mxu0 0.0
    %371 = vmatpush1.msra.mxu0 %v251
    %372 = vmatprep.subr.mxu0 0.0
    %373 = vmatpush1.msra.mxu0 %v252
    %374 = vmatprep.subr.mxu0 0.0
    %375 = vmatpush1.msra.mxu0 %v253
    %376 = vmatprep.subr.mxu0 0.0
    %377 = vmatpush1.msra.mxu0 %v254
    %378 = vmatprep.subr.mxu0 0.0
    %379 = vmatpush1.msra.mxu0 %v255
    %380 = vmatprep.subr.mxu0 0.0
    %381 = vmatpush1.msra.mxu0 %v256
    %382 = vmatprep.subr.mxu0 0.0
    %383 = vmatpush1.msra.mxu0 %v257
    %384 = vmatprep.subr.mxu0 0.0
    %385 = vmatpush1.msra.mxu0 %v258
    %386 = vmatprep.subr.mxu0 0.0
    %387 = vmatpush1.msra.mxu0 %v259
    %388 = vmatprep.subr.mxu0 0.0
    %389 = vmatpush1.msra.mxu0 %v260
    %390 = vmatprep.subr.mxu0 0.0
    %391 = vmatpush1.msra.mxu0 %v261
    %392 = vmatprep.subr.mxu0 0.0
    %393 = vmatpush1.msra.mxu0 0.0
    %394 = vmatprep.subr.mxu0 0.0
    %395 = vmatpush1.msra.mxu0 0.0
    %396 = vmatprep.subr.mxu0 0.0
    %397 = vmatpush1.msra.mxu0 0.0
    %398 = vmatprep.subr.mxu0 0.0
    %399 = vmatpush1.msra.mxu0 0.0
    %400 = vmatprep.subr.mxu0 0.0
    %401 = vmatpush1.msra.mxu0 0.0
    %402 = vmatprep.subr.mxu0 0.0
    %403 = vmatpush1.msra.mxu0 0.0
    %404 = vmatprep.subr.mxu0 0.0
    %405 = vmatpush1.msra.mxu0 0.0
    %406 = vmatprep.subr.mxu0 0.0
    %407 = vmatpush1.msra.mxu0 0.0
    %408 = vmatprep.subr.mxu0 0.0
    %409 = vmatpush1.msra.mxu0 0.0
    %410 = vmatprep.subr.mxu0 0.0
    %411 = vmatpush1.msra.mxu0 0.0
    %412 = vmatprep.subr.mxu0 0.0
    %413 = vmatpush1.msra.mxu0 0.0
    %414 = vmatprep.subr.mxu0 0.0
    %415 = vmatpush1.msra.mxu0 0.0
    %416 = vmatprep.subr.mxu0 0.0
    %417 = vmatpush1.msra.mxu0 0.0
    %418 = vmatprep.subr.mxu0 0.0
    %419 = vmatpush1.msra.mxu0 0.0
    %420 = vmatprep.subr.mxu0 0.0
    %421 = vmatpush1.msra.mxu0 0.0
    %422 = vmatprep.subr.mxu0 0.0
    %423 = vmatpush1.msra.mxu0 0.0
    %424 = vmatprep.mubr.f32.mxu0 0.0
    %425 = vmatmul.mubr.f32.gmra.mrb[0].mxu0 %v356
    %v426 = vpop.f32.mrb[0].mxu0
    %v427 = vadd.f32 0.0, %v426
    %v428 = vpop.f32.mrb[0].mxu0
    %429 = vdwg.mxu0
    %v430 = vadd.f32 %v359, %v427
    %v431 = vsub.f32 %v430, %v346
    %v432 = vmul.f32 %v343, %v431
    %v433 = vadd.f32 %v432, %v346
    %v434 = vtanh.pop %v433
    %v435 = vsub.f32 %v434, %v356
    %v436 = vmul.f32 %v353, %v435
    %v437 = vadd.f32 %v436, %v356
    %s438 = scalar_lea.vmem [#allocation13], 8
    %439 = vst [vmem:[%s438] sm:$0xff] %v437
    %s440 = scalar_lea.vmem [#allocation2], 16
    %v441 = vld [vmem:[%s440] sm:$0xff]
    %442 = vmatprep.subr.mxu0 0.0
    %443 = vmatpush1.msra.mxu0 %v246
    %444 = vmatprep.subr.mxu0 0.0
    %445 = vmatpush1.msra.mxu0 %v247
    %446 = vmatprep.subr.mxu0 0.0
    %447 = vmatpush1.msra.mxu0 %v248
    %448 = vmatprep.subr.mxu0 0.0
    %449 = vmatpush1.msra.mxu0 %v249
    %450 = vmatprep.subr.mxu0 0.0
    %451 = vmatpush1.msra.mxu0 %v250
    %452 = vmatprep.subr.mxu0 0.0
    %453 = vmatpush1.msra.mxu0 %v251
    %454 = vmatprep.subr.mxu0 0.0
    %455 = vmatpush1.msra.mxu0 %v252
    %456 = vmatprep.subr.mxu0 0.0
    %457 = vmatpush1.msra.mxu0 %v253
    %458 = vmatprep.subr.mxu0 0.0
    %459 = vmatpush1.msra.mxu0 %v254
    %460 = vmatprep.subr.mxu0 0.0
    %461 = vmatpush1.msra.mxu0 %v255
    %462 = vmatprep.subr.mxu0 0.0
    %463 = vmatpush1.msra.mxu0 %v256
    %464 = vmatprep.subr.mxu0 0.0
    %465 = vmatpush1.msra.mxu0 %v257
    %466 = vmatprep.subr.mxu0 0.0
    %467 = vmatpush1.msra.mxu0 %v258
    %468 = vmatprep.subr.mxu0 0.0
    %469 = vmatpush1.msra.mxu0 %v259
    %470 = vmatprep.subr.mxu0 0.0
    %471 = vmatpush1.msra.mxu0 %v260
    %472 = vmatprep.subr.mxu0 0.0
    %473 = vmatpush1.msra.mxu0 %v261
    %474 = vmatprep.subr.mxu0 0.0
    %475 = vmatpush1.msra.mxu0 0.0
    %476 = vmatprep.subr.mxu0 0.0
    %477 = vmatpush1.msra.mxu0 0.0
    %478 = vmatprep.subr.mxu0 0.0
    %479 = vmatpush1.msra.mxu0 0.0
    %480 = vmatprep.subr.mxu0 0.0
    %481 = vmatpush1.msra.mxu0 0.0
    %482 = vmatprep.subr.mxu0 0.0
    %483 = vmatpush1.msra.mxu0 0.0
    %484 = vmatprep.subr.mxu0 0.0
    %485 = vmatpush1.msra.mxu0 0.0
    %486 = vmatprep.subr.mxu0 0.0
    %487 = vmatpush1.msra.mxu0 0.0
    %488 = vmatprep.subr.mxu0 0.0
    %489 = vmatpush1.msra.mxu0 0.0
    %490 = vmatprep.subr.mxu0 0.0
    %491 = vmatpush1.msra.mxu0 0.0
    %492 = vmatprep.subr.mxu0 0.0
    %493 = vmatpush1.msra.mxu0 0.0
    %494 = vmatprep.subr.mxu0 0.0
    %495 = vmatpush1.msra.mxu0 0.0
    %496 = vmatprep.subr.mxu0 0.0
    %497 = vmatpush1.msra.mxu0 0.0
    %498 = vmatprep.subr.mxu0 0.0
    %499 = vmatpush1.msra.mxu0 0.0
    %500 = vmatprep.subr.mxu0 0.0
    %501 = vmatpush1.msra.mxu0 0.0
    %502 = vmatprep.subr.mxu0 0.0
    %503 = vmatpush1.msra.mxu0 0.0
    %504 = vmatprep.subr.mxu0 0.0
    %505 = vmatpush1.msra.mxu0 0.0
    %506 = vmatprep.mubr.f32.mxu0 0.0
    %507 = vmatmul.mubr.f32.gmra.mrb[0].mxu0 %v437
    %v508 = vpop.f32.mrb[0].mxu0
    %v509 = vadd.f32 0.0, %v508
    %v510 = vpop.f32.mrb[0].mxu0
    %511 = vdwg.mxu0
    %v512 = vadd.f32 %v441, %v509
    %v513 = vsub.f32 %v512, %v433
    %v514 = vmul.f32 %v343, %v513
    %v515 = vadd.f32 %v514, %v433
    %v516 = vtanh.pop %v515
    %v517 = vsub.f32 %v516, %v437
    %v518 = vmul.f32 %v353, %v517
    %v519 = vadd.f32 %v518, %v437
    %s520 = scalar_lea.vmem [#allocation13], 16
    %521 = vst [vmem:[%s520] sm:$0xff] %v519
    %s522 = scalar_lea.vmem [#allocation2], 24
    %v523 = vld [vmem:[%s522] sm:$0xff]
    %524 = vmatprep.subr.mxu0 0.0
    %525 = vmatpush1.msra.mxu0 %v246
    %526 = vmatprep.subr.mxu0 0.0
    %527 = vmatpush1.msra.mxu0 %v247
    %528 = vmatprep.subr.mxu0 0.0
    %529 = vmatpush1.msra.mxu0 %v248
    %530 = vmatprep.subr.mxu0 0.0
    %531 = vmatpush1.msra.mxu0 %v249
    %532 = vmatprep.subr.mxu0 0.0
    %533 = vmatpush1.msra.mxu0 %v250
    %534 = vmatprep.subr.mxu0 0.0
    %535 = vmatpush1.msra.mxu0 %v251
    %536 = vmatprep.subr.mxu0 0.0
    %537 = vmatpush1.msra.mxu0 %v252
    %538 = vmatprep.subr.mxu0 0.0
    %539 = vmatpush1.msra.mxu0 %v253
    %540 = vmatprep.subr.mxu0 0.0
    %541 = vmatpush1.msra.mxu0 %v254
    %542 = vmatprep.subr.mxu0 0.0
    %543 = vmatpush1.msra.mxu0 %v255
    %544 = vmatprep.subr.mxu0 0.0
    %545 = vmatpush1.msra.mxu0 %v256
    %546 = vmatprep.subr.mxu0 0.0
    %547 = vmatpush1.msra.mxu0 %v257
    %548 = vmatprep.subr.mxu0 0.0
    %549 = vmatpush1.msra.mxu0 %v258
    %550 = vmatprep.subr.mxu0 0.0
    %551 = vmatpush1.msra.mxu0 %v259
    %552 = vmatprep.subr.mxu0 0.0
    %553 = vmatpush1.msra.mxu0 %v260
    %554 = vmatprep.subr.mxu0 0.0
    %555 = vmatpush1.msra.mxu0 %v261
    %556 = vmatprep.subr.mxu0 0.0
    %557 = vmatpush1.msra.mxu0 0.0
    %558 = vmatprep.subr.mxu0 0.0
    %559 = vmatpush1.msra.mxu0 0.0
    %560 = vmatprep.subr.mxu0 0.0
    %561 = vmatpush1.msra.mxu0 0.0
    %562 = vmatprep.subr.mxu0 0.0
    %563 = vmatpush1.msra.mxu0 0.0
    %564 = vmatprep.subr.mxu0 0.0
    %565 = vmatpush1.msra.mxu0 0.0
    %566 = vmatprep.subr.mxu0 0.0
    %567 = vmatpush1.msra.mxu0 0.0
    %568 = vmatprep.subr.mxu0 0.0
    %569 = vmatpush1.msra.mxu0 0.0
    %570 = vmatprep.subr.mxu0 0.0
    %571 = vmatpush1.msra.mxu0 0.0
    %572 = vmatprep.subr.mxu0 0.0
    %573 = vmatpush1.msra.mxu0 0.0
    %574 = vmatprep.subr.mxu0 0.0
    %575 = vmatpush1.msra.mxu0 0.0
    %576 = vmatprep.subr.mxu0 0.0
    %577 = vmatpush1.msra.mxu0 0.0
    %578 = vmatprep.subr.mxu0 0.0
    %579 = vmatpush1.msra.mxu0 0.0
    %580 = vmatprep.subr.mxu0 0.0
    %581 = vmatpush1.msra.mxu0 0.0
    %582 = vmatprep.subr.mxu0 0.0
    %583 = vmatpush1.msra.mxu0 0.0
    %584 = vmatprep.subr.mxu0 0.0
    %585 = vmatpush1.msra.mxu0 0.0
    %586 = vmatprep.subr.mxu0 0.0
    %587 = vmatpush1.msra.mxu0 0.0
    %588 = vmatprep.mubr.f32.mxu0 0.0
    %589 = vmatmul.mubr.f32.gmra.mrb[0].mxu0 %v519
    %v590 = vpop.f32.mrb[0].mxu0
    %v591 = vadd.f32 0.0, %v590
    %v592 = vpop.f32.mrb[0].mxu0
    %593 = vdwg.mxu0
    %v594 = vadd.f32 %v523, %v591
    %v595 = vsub.f32 %v594, %v515
    %v596 = vmul.f32 %v343, %v595
    %v597 = vadd.f32 %v596, %v515
    %v598 = vtanh.pop %v597
    %v599 = vsub.f32 %v598, %v519
    %v600 = vmul.f32 %v353, %v599
    %v601 = vadd.f32 %v600, %v519
    %s602 = scalar_lea.vmem [#allocation13], 24
    %603 = vst [vmem:[%s602] sm:$0xff] %v601
    %s604 = scalar_lea.vmem [#allocation2], 32
    %v605 = vld [vmem:[%s604] sm:$0xff]
    %606 = vmatprep.subr.mxu0 0.0
    %607 = vmatpush1.msra.mxu0 %v246
    %608 = vmatprep.subr.mxu0 0.0
    %609 = vmatpush1.msra.mxu0 %v247
    %610 = vmatprep.subr.mxu0 0.0
    %611 = vmatpush1.msra.mxu0 %v248
    %612 = vmatprep.subr.mxu0 0.0
    %613 = vmatpush1.msra.mxu0 %v249
    %614 = vmatprep.subr.mxu0 0.0
    %615 = vmatpush1.msra.mxu0 %v250
    %616 = vmatprep.subr.mxu0 0.0
    %617 = vmatpush1.msra.mxu0 %v251
    %618 = vmatprep.subr.mxu0 0.0
    %619 = vmatpush1.msra.mxu0 %v252
    %620 = vmatprep.subr.mxu0 0.0
    %621 = vmatpush1.msra.mxu0 %v253
    %622 = vmatprep.subr.mxu0 0.0
    %623 = vmatpush1.msra.mxu0 %v254
    %624 = vmatprep.subr.mxu0 0.0
    %625 = vmatpush1.msra.mxu0 %v255
    %626 = vmatprep.subr.mxu0 0.0
    %627 = vmatpush1.msra.mxu0 %v256
    %628 = vmatprep.subr.mxu0 0.0
    %629 = vmatpush1.msra.mxu0 %v257
    %630 = vmatprep.subr.mxu0 0.0
    %631 = vmatpush1.msra.mxu0 %v258
    %632 = vmatprep.subr.mxu0 0.0
    %633 = vmatpush1.msra.mxu0 %v259
    %634 = vmatprep.subr.mxu0 0.0
    %635 = vmatpush1.msra.mxu0 %v260
    %636 = vmatprep.subr.mxu0 0.0
    %637 = vmatpush1.msra.mxu0 %v261
    %638 = vmatprep.subr.mxu0 0.0
    %639 = vmatpush1.msra.mxu0 0.0
    %640 = vmatprep.subr.mxu0 0.0
    %641 = vmatpush1.msra.mxu0 0.0
    %642 = vmatprep.subr.mxu0 0.0
    %643 = vmatpush1.msra.mxu0 0.0
    %644 = vmatprep.subr.mxu0 0.0
    %645 = vmatpush1.msra.mxu0 0.0
    %646 = vmatprep.subr.mxu0 0.0
    %647 = vmatpush1.msra.mxu0 0.0
    %648 = vmatprep.subr.mxu0 0.0
    %649 = vmatpush1.msra.mxu0 0.0
    %650 = vmatprep.subr.mxu0 0.0
    %651 = vmatpush1.msra.mxu0 0.0
    %652 = vmatprep.subr.mxu0 0.0
    %653 = vmatpush1.msra.mxu0 0.0
    %654 = vmatprep.subr.mxu0 0.0
    %655 = vmatpush1.msra.mxu0 0.0
    %656 = vmatprep.subr.mxu0 0.0
    %657 = vmatpush1.msra.mxu0 0.0
    %658 = vmatprep.subr.mxu0 0.0
    %659 = vmatpush1.msra.mxu0 0.0
    %660 = vmatprep.subr.mxu0 0.0
    %661 = vmatpush1.msra.mxu0 0.0
    %662 = vmatprep.subr.mxu0 0.0
    %663 = vmatpush1.msra.mxu0 0.0
    %664 = vmatprep.subr.mxu0 0.0
    %665 = vmatpush1.msra.mxu0 0.0
    %666 = vmatprep.subr.mxu0 0.0
    %667 = vmatpush1.msra.mxu0 0.0
    %668 = vmatprep.subr.mxu0 0.0
    %669 = vmatpush1.msra.mxu0 0.0
    %670 = vmatprep.mubr.f32.mxu0 0.0
    %671 = vmatmul.mubr.f32.gmra.mrb[0].mxu0 %v601
    %v672 = vpop.f32.mrb[0].mxu0
    %v673 = vadd.f32 0.0, %v672
    %v674 = vpop.f32.mrb[0].mxu0
    %675 = vdwg.mxu0
    %v676 = vadd.f32 %v605, %v673
    %v677 = vsub.f32 %v676, %v597
    %v678 = vmul.f32 %v343, %v677
    %v679 = vadd.f32 %v678, %v597
    %v680 = vtanh.pop %v679
    %v681 = vsub.f32 %v680, %v601
    %v682 = vmul.f32 %v353, %v681
    %v683 = vadd.f32 %v682, %v601
    %s684 = scalar_lea.vmem [#allocation13], 32
    %685 = vst [vmem:[%s684] sm:$0xff] %v683
    %s686 = scalar_lea.vmem [#allocation2], 40
    %v687 = vld [vmem:[%s686] sm:$0xff]
    %688 = vmatprep.subr.mxu0 0.0
    %689 = vmatpush1.msra.mxu0 %v246
    %690 = vmatprep.subr.mxu0 0.0
    %691 = vmatpush1.msra.mxu0 %v247
    %692 = vmatprep.subr.mxu0 0.0
    %693 = vmatpush1.msra.mxu0 %v248
    %694 = vmatprep.subr.mxu0 0.0
    %695 = vmatpush1.msra.mxu0 %v249
    %696 = vmatprep.subr.mxu0 0.0
    %697 = vmatpush1.msra.mxu0 %v250
    %698 = vmatprep.subr.mxu0 0.0
    %699 = vmatpush1.msra.mxu0 %v251
    %700 = vmatprep.subr.mxu0 0.0
    %701 = vmatpush1.msra.mxu0 %v252
    %702 = vmatprep.subr.mxu0 0.0
    %703 = vmatpush1.msra.mxu0 %v253
    %704 = vmatprep.subr.mxu0 0.0
    %705 = vmatpush1.msra.mxu0 %v254
    %706 = vmatprep.subr.mxu0 0.0
    %707 = vmatpush1.msra.mxu0 %v255
    %708 = vmatprep.subr.mxu0 0.0
    %709 = vmatpush1.msra.mxu0 %v256
    %710 = vmatprep.subr.mxu0 0.0
    %711 = vmatpush1.msra.mxu0 %v257
    %712 = vmatprep.subr.mxu0 0.0
    %713 = vmatpush1.msra.mxu0 %v258
    %714 = vmatprep.subr.mxu0 0.0
    %715 = vmatpush1.msra.mxu0 %v259
    %716 = vmatprep.subr.mxu0 0.0
    %717 = vmatpush1.msra.mxu0 %v260
    %718 = vmatprep.subr.mxu0 0.0
    %719 = vmatpush1.msra.mxu0 %v261
    %720 = vmatprep.subr.mxu0 0.0
    %721 = vmatpush1.msra.mxu0 0.0
    %722 = vmatprep.subr.mxu0 0.0
    %723 = vmatpush1.msra.mxu0 0.0
    %724 = vmatprep.subr.mxu0 0.0
    %725 = vmatpush1.msra.mxu0 0.0
    %726 = vmatprep.subr.mxu0 0.0
    %727 = vmatpush1.msra.mxu0 0.0
    %728 = vmatprep.subr.mxu0 0.0
    %729 = vmatpush1.msra.mxu0 0.0
    %730 = vmatprep.subr.mxu0 0.0
    %731 = vmatpush1.msra.mxu0 0.0
    %732 = vmatprep.subr.mxu0 0.0
    %733 = vmatpush1.msra.mxu0 0.0
    %734 = vmatprep.subr.mxu0 0.0
    %735 = vmatpush1.msra.mxu0 0.0
    %736 = vmatprep.subr.mxu0 0.0
    %737 = vmatpush1.msra.mxu0 0.0
    %738 = vmatprep.subr.mxu0 0.0
    %739 = vmatpush1.msra.mxu0 0.0
    %740 = vmatprep.subr.mxu0 0.0
    %741 = vmatpush1.msra.mxu0 0.0
    %742 = vmatprep.subr.mxu0 0.0
    %743 = vmatpush1.msra.mxu0 0.0
    %744 = vmatprep.subr.mxu0 0.0
    %745 = vmatpush1.msra.mxu0 0.0
    %746 = vmatprep.subr.mxu0 0.0
    %747 = vmatpush1.msra.mxu0 0.0
    %748 = vmatprep.subr.mxu0 0.0
    %749 = vmatpush1.msra.mxu0 0.0
    %750 = vmatprep.subr.mxu0 0.0
    %751 = vmatpush1.msra.mxu0 0.0
    %752 = vmatprep.mubr.f32.mxu0 0.0
    %753 = vmatmul.mubr.f32.gmra.mrb[0].mxu0 %v683
    %v754 = vpop.f32.mrb[0].mxu0
    %v755 = vadd.f32 0.0, %v754
    %v756 = vpop.f32.mrb[0].mxu0
    %757 = vdwg.mxu0
    %v758 = vadd.f32 %v687, %v755
    %v759 = vsub.f32 %v758, %v679
    %v760 = vmul.f32 %v343, %v759
    %v761 = vadd.f32 %v760, %v679
    %v762 = vtanh.pop %v761
    %v763 = vsub.f32 %v762, %v683
    %v764 = vmul.f32 %v353, %v763
    %v765 = vadd.f32 %v764, %v683
    %s766 = scalar_lea.vmem [#allocation13], 40
    %767 = vst [vmem:[%s766] sm:$0xff] %v765
    %s768 = scalar_lea.vmem [#allocation2], 48
    %v769 = vld [vmem:[%s768] sm:$0xff]
    %770 = vmatprep.subr.mxu0 0.0
    %771 = vmatpush1.msra.mxu0 %v246
    %772 = vmatprep.subr.mxu0 0.0
    %773 = vmatpush1.msra.mxu0 %v247
    %774 = vmatprep.subr.mxu0 0.0
    %775 = vmatpush1.msra.mxu0 %v248
    %776 = vmatprep.subr.mxu0 0.0
    %777 = vmatpush1.msra.mxu0 %v249
    %778 = vmatprep.subr.mxu0 0.0
    %779 = vmatpush1.msra.mxu0 %v250
    %780 = vmatprep.subr.mxu0 0.0
    %781 = vmatpush1.msra.mxu0 %v251
    %782 = vmatprep.subr.mxu0 0.0
    %783 = vmatpush1.msra.mxu0 %v252
    %784 = vmatprep.subr.mxu0 0.0
    %785 = vmatpush1.msra.mxu0 %v253
    %786 = vmatprep.subr.mxu0 0.0
    %787 = vmatpush1.msra.mxu0 %v254
    %788 = vmatprep.subr.mxu0 0.0
    %789 = vmatpush1.msra.mxu0 %v255
    %790 = vmatprep.subr.mxu0 0.0
    %791 = vmatpush1.msra.mxu0 %v256
    %792 = vmatprep.subr.mxu0 0.0
    %793 = vmatpush1.msra.mxu0 %v257
    %794 = vmatprep.subr.mxu0 0.0
    %795 = vmatpush1.msra.mxu0 %v258
    %796 = vmatprep.subr.mxu0 0.0
    %797 = vmatpush1.msra.mxu0 %v259
    %798 = vmatprep.subr.mxu0 0.0
    %799 = vmatpush1.msra.mxu0 %v260
    %800 = vmatprep.subr.mxu0 0.0
    %801 = vmatpush1.msra.mxu0 %v261
    %802 = vmatprep.subr.mxu0 0.0
    %803 = vmatpush1.msra.mxu0 0.0
    %804 = vmatprep.subr.mxu0 0.0
    %805 = vmatpush1.msra.mxu0 0.0
    %806 = vmatprep.subr.mxu0 0.0
    %807 = vmatpush1.msra.mxu0 0.0
    %808 = vmatprep.subr.mxu0 0.0
    %809 = vmatpush1.msra.mxu0 0.0
    %810 = vmatprep.subr.mxu0 0.0
    %811 = vmatpush1.msra.mxu0 0.0
    %812 = vmatprep.subr.mxu0 0.0
    %813 = vmatpush1.msra.mxu0 0.0
    %814 = vmatprep.subr.mxu0 0.0
    %815 = vmatpush1.msra.mxu0 0.0
    %816 = vmatprep.subr.mxu0 0.0
    %817 = vmatpush1.msra.mxu0 0.0
    %818 = vmatprep.subr.mxu0 0.0
    %819 = vmatpush1.msra.mxu0 0.0
    %820 = vmatprep.subr.mxu0 0.0
    %821 = vmatpush1.msra.mxu0 0.0
    %822 = vmatprep.subr.mxu0 0.0
    %823 = vmatpush1.msra.mxu0 0.0
    %824 = vmatprep.subr.mxu0 0.0
    %825 = vmatpush1.msra.mxu0 0.0
    %826 = vmatprep.subr.mxu0 0.0
    %827 = vmatpush1.msra.mxu0 0.0
    %828 = vmatprep.subr.mxu0 0.0
    %829 = vmatpush1.msra.mxu0 0.0
    %830 = vmatprep.subr.mxu0 0.0
    %831 = vmatpush1.msra.mxu0 0.0
    %832 = vmatprep.subr.mxu0 0.0
    %833 = vmatpush1.msra.mxu0 0.0
    %834 = vmatprep.mubr.f32.mxu0 0.0
    %835 = vmatmul.mubr.f32.gmra.mrb[0].mxu0 %v765
    %v836 = vpop.f32.mrb[0].mxu0
    %v837 = vadd.f32 0.0, %v836
    %v838 = vpop.f32.mrb[0].mxu0
    %839 = vdwg.mxu0
    %v840 = vadd.f32 %v769, %v837
    %v841 = vsub.f32 %v840, %v761
    %v842 = vmul.f32 %v343, %v841
    %v843 = vadd.f32 %v842, %v761
    %v844 = vtanh.pop %v843
    %v845 = vsub.f32 %v844, %v765
    %v846 = vmul.f32 %v353, %v845
    %v847 = vadd.f32 %v846, %v765
    %s848 = scalar_lea.vmem [#allocation13], 48
    %849 = vst [vmem:[%s848] sm:$0xff] %v847
    %s850 = scalar_lea.vmem [#allocation2], 56
    %v851 = vld [vmem:[%s850] sm:$0xff]
    %852 = vmatprep.subr.mxu0 0.0
    %853 = vmatpush1.msra.mxu0 %v246
    %854 = vmatprep.subr.mxu0 0.0
    %855 = vmatpush1.msra.mxu0 %v247
    %856 = vmatprep.subr.mxu0 0.0
    %857 = vmatpush1.msra.mxu0 %v248
    %858 = vmatprep.subr.mxu0 0.0
    %859 = vmatpush1.msra.mxu0 %v249
    %860 = vmatprep.subr.mxu0 0.0
    %861 = vmatpush1.msra.mxu0 %v250
    %862 = vmatprep.subr.mxu0 0.0
    %863 = vmatpush1.msra.mxu0 %v251
    %864 = vmatprep.subr.mxu0 0.0
    %865 = vmatpush1.msra.mxu0 %v252
    %866 = vmatprep.subr.mxu0 0.0
    %867 = vmatpush1.msra.mxu0 %v253
    %868 = vmatprep.subr.mxu0 0.0
    %869 = vmatpush1.msra.mxu0 %v254
    %870 = vmatprep.subr.mxu0 0.0
    %871 = vmatpush1.msra.mxu0 %v255
    %872 = vmatprep.subr.mxu0 0.0
    %873 = vmatpush1.msra.mxu0 %v256
    %874 = vmatprep.subr.mxu0 0.0
    %875 = vmatpush1.msra.mxu0 %v257
    %876 = vmatprep.subr.mxu0 0.0
    %877 = vmatpush1.msra.mxu0 %v258
    %878 = vmatprep.subr.mxu0 0.0
    %879 = vmatpush1.msra.mxu0 %v259
    %880 = vmatprep.subr.mxu0 0.0
    %881 = vmatpush1.msra.mxu0 %v260
    %882 = vmatprep.subr.mxu0 0.0
    %883 = vmatpush1.msra.mxu0 %v261
    %884 = vmatprep.subr.mxu0 0.0
    %885 = vmatpush1.msra.mxu0 0.0
    %886 = vmatprep.subr.mxu0 0.0
    %887 = vmatpush1.msra.mxu0 0.0
    %888 = vmatprep.subr.mxu0 0.0
    %889 = vmatpush1.msra.mxu0 0.0
    %890 = vmatprep.subr.mxu0 0.0
    %891 = vmatpush1.msra.mxu0 0.0
    %892 = vmatprep.subr.mxu0 0.0
    %893 = vmatpush1.msra.mxu0 0.0
    %894 = vmatprep.subr.mxu0 0.0
    %895 = vmatpush1.msra.mxu0 0.0
    %896 = vmatprep.subr.mxu0 0.0
    %897 = vmatpush1.msra.mxu0 0.0
    %898 = vmatprep.subr.mxu0 0.0
    %899 = vmatpush1.msra.mxu0 0.0
    %900 = vmatprep.subr.mxu0 0.0
    %901 = vmatpush1.msra.mxu0 0.0
    %902 = vmatprep.subr.mxu0 0.0
    %903 = vmatpush1.msra.mxu0 0.0
    %904 = vmatprep.subr.mxu0 0.0
    %905 = vmatpush1.msra.mxu0 0.0
    %906 = vmatprep.subr.mxu0 0.0
    %907 = vmatpush1.msra.mxu0 0.0
    %908 = vmatprep.subr.mxu0 0.0
    %909 = vmatpush1.msra.mxu0 0.0
    %910 = vmatprep.subr.mxu0 0.0
    %911 = vmatpush1.msra.mxu0 0.0
    %912 = vmatprep.subr.mxu0 0.0
    %913 = vmatpush1.msra.mxu0 0.0
    %914 = vmatprep.subr.mxu0 0.0
    %915 = vmatpush1.msra.mxu0 0.0
    %916 = vmatprep.mubr.f32.mxu0 0.0
    %917 = vmatmul.mubr.f32.gmra.mrb[0].mxu0 %v847
    %v918 = vpop.f32.mrb[0].mxu0
    %v919 = vadd.f32 0.0, %v918
    %v920 = vpop.f32.mrb[0].mxu0
    %921 = vdwg.mxu0
    %v922 = vadd.f32 %v851, %v919
    %v923 = vsub.f32 %v922, %v843
    %v924 = vmul.f32 %v343, %v923
    %v925 = vadd.f32 %v924, %v843
    %v926 = vtanh.pop %v925
    %v927 = vsub.f32 %v926, %v847
    %v928 = vmul.f32 %v353, %v927
    %v929 = vadd.f32 %v928, %v847
    %s930 = scalar_lea.vmem [#allocation13], 56
    %931 = vst [vmem:[%s930] sm:$0xff] %v929
    %932 = vst [vmem:[#allocation3] sm:$0xff] %v929
    %933 = vst [vmem:[#allocation4] sm:$0xff] %v925
    %v934 = vld [vmem:[#allocation13] sm:$0xff]
    %v935 = vld [vmem:[#allocation13 + $0x8] sm:$0xff]
    %v936 = vld [vmem:[#allocation13 + $0x10] sm:$0xff]
    %v937 = vld [vmem:[#allocation13 + $0x18] sm:$0xff]
    %v938 = vld [vmem:[#allocation13 + $0x20] sm:$0xff]
    %v939 = vld [vmem:[#allocation13 + $0x28] sm:$0xff]
    %v940 = vld [vmem:[#allocation13 + $0x30] sm:$0xff]
    %v941 = vld [vmem:[#allocation13 + $0x38] sm:$0xff]
    %v942 = vld [vmem:[#allocation11] sm:$0xff]
    %v943 = vld [vmem:[#allocation11 + $0x8] sm:$0xff]
    %v944 = vld [vmem:[#allocation11 + $0x10] sm:$0xff]
    %v945 = vld [vmem:[#allocation11 + $0x18] sm:$0xff]
    %v946 = vld [vmem:[#allocation11 + $0x20] sm:$0xff]
    %v947 = vld [vmem:[#allocation11 + $0x28] sm:$0xff]
    %v948 = vld [vmem:[#allocation11 + $0x30] sm:$0xff]
    %v949 = vld [vmem:[#allocation11 + $0x38] sm:$0xff]
    %v950 = vld [vmem:[#allocation11 + $0x40] sm:$0xff]
    %v951 = vld [vmem:[#allocation11 + $0x48] sm:$0xff]
    %v952 = vld [vmem:[#allocation11 + $0x50] sm:$0xff]
    %v953 = vld [vmem:[#allocation11 + $0x58] sm:$0xff]
    %v954 = vld [vmem:[#allocation11 + $0x60] sm:$0xff]
    %v955 = vld [vmem:[#allocation11 + $0x68] sm:$0xff]
    %v956 = vld [vmem:[#allocation11 + $0x70] sm:$0xff]
    %v957 = vld [vmem:[#allocation11 + $0x78] sm:$0xff]
    %v958 = vld [vmem:[%s5] sm:$0x1]
    %v960 = vlaneseq
    %v961 = vshrl.u32 %v960, 7
    %v962 = vsub.s32 0, %v961
    %v963 = vrot.slane %v958, %v962
    %965 = vmatprep.subr.mxu0 0.0
    %966 = vmatpush1.msra.mxu0 %v942
    %967 = vmatprep.subr.mxu0 0.0
    %968 = vmatpush1.msra.mxu0 %v943
    %969 = vmatprep.subr.mxu0 0.0
    %970 = vmatpush1.msra.mxu0 %v944
    %971 = vmatprep.subr.mxu0 0.0
    %972 = vmatpush1.msra.mxu0 %v945
    %973 = vmatprep.subr.mxu0 0.0
    %974 = vmatpush1.msra.mxu0 %v946
    %975 = vmatprep.subr.mxu0 0.0
    %976 = vmatpush1.msra.mxu0 %v947
    %977 = vmatprep.subr.mxu0 0.0
    %978 = vmatpush1.msra.mxu0 %v948
    %979 = vmatprep.subr.mxu0 0.0
    %980 = vmatpush1.msra.mxu0 %v949
    %981 = vmatprep.subr.mxu0 0.0
    %982 = vmatpush1.msra.mxu0 %v950
    %983 = vmatprep.subr.mxu0 0.0
    %984 = vmatpush1.msra.mxu0 %v951
    %985 = vmatprep.subr.mxu0 0.0
    %986 = vmatpush1.msra.mxu0 %v952
    %987 = vmatprep.subr.mxu0 0.0
    %988 = vmatpush1.msra.mxu0 %v953
    %989 = vmatprep.subr.mxu0 0.0
    %990 = vmatpush1.msra.mxu0 %v954
    %991 = vmatprep.subr.mxu0 0.0
    %992 = vmatpush1.msra.mxu0 %v955
    %993 = vmatprep.subr.mxu0 0.0
    %994 = vmatpush1.msra.mxu0 %v956
    %995 = vmatprep.subr.mxu0 0.0
    %996 = vmatpush1.msra.mxu0 %v957
    %997 = vmatprep.subr.mxu0 0.0
    %998 = vmatpush1.msra.mxu0 0.0
    %999 = vmatprep.subr.mxu0 0.0
    %1000 = vmatpush1.msra.mxu0 0.0
    %1001 = vmatprep.subr.mxu0 0.0
    %1002 = vmatpush1.msra.mxu0 0.0
    %1003 = vmatprep.subr.mxu0 0.0
    %1004 = vmatpush1.msra.mxu0 0.0
    %1005 = vmatprep.subr.mxu0 0.0
    %1006 = vmatpush1.msra.mxu0 0.0
    %1007 = vmatprep.subr.mxu0 0.0
    %1008 = vmatpush1.msra.mxu0 0.0
    %1009 = vmatprep.subr.mxu0 0.0
    %1010 = vmatpush1.msra.mxu0 0.0
    %1011 = vmatprep.subr.mxu0 0.0
    %1012 = vmatpush1.msra.mxu0 0.0
    %1013 = vmatprep.subr.mxu0 0.0
    %1014 = vmatpush1.msra.mxu0 0.0
    %1015 = vmatprep.subr.mxu0 0.0
    %1016 = vmatpush1.msra.mxu0 0.0
    %1017 = vmatprep.subr.mxu0 0.0
    %1018 = vmatpush1.msra.mxu0 0.0
    %1019 = vmatprep.subr.mxu0 0.0
    %1020 = vmatpush1.msra.mxu0 0.0
    %1021 = vmatprep.subr.mxu0 0.0
    %1022 = vmatpush1.msra.mxu0 0.0
    %1023 = vmatprep.subr.mxu0 0.0
    %1024 = vmatpush1.msra.mxu0 0.0
    %1025 = vmatprep.subr.mxu0 0.0
    %1026 = vmatpush1.msra.mxu0 0.0
    %1027 = vmatprep.subr.mxu0 0.0
    %1028 = vmatpush1.msra.mxu0 0.0
    %1029 = vmatprep.mubr.f32.mxu0 0.0
    %1030 = vmatmul.mubr.f32.gmra.mrb[0].mxu0 %v934
    %v1031 = vpop.f32.mrb[0].mxu0
    %v1032 = vadd.f32 %v963, %v1031
    %v1033 = vpop.f32.mrb[0].mxu0
    %1034 = vmatprep.mubr.f32.mxu0 0.0
    %1035 = vmatmul.mubr.f32.gmra.mrb[0].mxu0 %v935
    %v1036 = vpop.f32.mrb[0].mxu0
    %v1037 = vadd.f32 %v963, %v1036
    %v1038 = vpop.f32.mrb[0].mxu0
    %1039 = vmatprep.mubr.f32.mxu0 0.0
    %1040 = vmatmul.mubr.f32.gmra.mrb[0].mxu0 %v936
    %v1041 = vpop.f32.mrb[0].mxu0
    %v1042 = vadd.f32 %v963, %v1041
    %v1043 = vpop.f32.mrb[0].mxu0
    %1044 = vmatprep.mubr.f32.mxu0 0.0
    %1045 = vmatmul.mubr.f32.gmra.mrb[0].mxu0 %v937
    %v1046 = vpop.f32.mrb[0].mxu0
    %v1047 = vadd.f32 %v963, %v1046
    %v1048 = vpop.f32.mrb[0].mxu0
    %1049 = vmatprep.mubr.f32.mxu0 0.0
    %1050 = vmatmul.mubr.f32.gmra.mrb[0].mxu0 %v938
    %v1051 = vpop.f32.mrb[0].mxu0
    %v1052 = vadd.f32 %v963, %v1051
    %v1053 = vpop.f32.mrb[0].mxu0
    %1054 = vmatprep.mubr.f32.mxu0 0.0
    %1055 = vmatmul.mubr.f32.gmra.mrb[0].mxu0 %v939
    %v1056 = vpop.f32.mrb[0].mxu0
    %v1057 = vadd.f32 %v963, %v1056
    %v1058 = vpop.f32.mrb[0].mxu0
    %1059 = vmatprep.mubr.f32.mxu0 0.0
    %1060 = vmatmul.mubr.f32.gmra.mrb[0].mxu0 %v940
    %v1061 = vpop.f32.mrb[0].mxu0
    %v1062 = vadd.f32 %v963, %v1061
    %v1063 = vpop.f32.mrb[0].mxu0
    %1064 = vmatprep.mubr.f32.mxu0 0.0
    %1065 = vmatmul.mubr.f32.gmra.mrb[0].mxu0 %v941
    %v1066 = vpop.f32.mrb[0].mxu0
    %v1067 = vadd.f32 %v963, %v1066
    %v1068 = vpop.f32.mrb[0].mxu0
    %1069 = vdwg.mxu0
    %1070 = vst [vmem:[#allocation14] sm:$0xff] %v1032
    %1071 = vst [vmem:[#allocation14 + $0x8] sm:$0xff] %v1037
    %1072 = vst [vmem:[#allocation14 + $0x10] sm:$0xff] %v1042
    %1073 = vst [vmem:[#allocation14 + $0x18] sm:$0xff] %v1047
    %1074 = vst [vmem:[#allocation14 + $0x20] sm:$0xff] %v1052
    %1075 = vst [vmem:[#allocation14 + $0x28] sm:$0xff] %v1057
    %1076 = vst [vmem:[#allocation14 + $0x30] sm:$0xff] %v1062
    %1077 = vst [vmem:[#allocation14 + $0x38] sm:$0xff] %v1067
    // Predicated region
    $region54: #{tpu_custom_call.1} parent=1 // pred_check
      _
    $region55: #{tpu_custom_call.1} parent=1 // pred_check_branch
      %1079 = sbr.rel (0) target = $region57
    $region56: #{tpu_custom_call.1} parent=1 // pred_region
      %s1081 = ssub.s32 1024, 1024
      %1082 = vsyncadd [#allocation7], %s1081
      %s1083 = sshll.u32 [#allocation13], 4
      %s1084 = int_to_ptr.vmem [resolvable:$true] %s1083
      %1089 = dma.vmem_to_hbm [thread:$0]  %s1084, 1024, %s8, [#allocation7], 128, 128, 8
    $region57: #{tpu_custom_call.1} parent=1 // pred_fallthru
      _
    // Predicated region
    $region58: #{tpu_custom_call.1} parent=1 // pred_check
      _
    $region59: #{tpu_custom_call.1} parent=1 // pred_check_branch
      %1091 = sbr.rel (0) target = $region61
    $region60: #{tpu_custom_call.1} parent=1 // pred_region
      %s1093 = ssub.s32 1024, 1024
      %1094 = vsyncadd [#allocation15], %s1093
      %s1095 = sshll.u32 [#allocation14], 4
      %s1096 = int_to_ptr.vmem [resolvable:$true] %s1095
      %1101 = dma.vmem_to_hbm [thread:$0]  %s1096, 1024, %s9, [#allocation15], 128, 128, 8
    $region61: #{tpu_custom_call.1} parent=1 // pred_fallthru
      _
    // Predicated region
    $region62: #{tpu_custom_call.1} parent=1 // pred_check
      _
    $region63: #{tpu_custom_call.1} parent=1 // pred_check_branch
      %1103 = sbr.rel (0) target = $region65
    $region64: #{tpu_custom_call.1} parent=1 // pred_region
      %1104 = dma.done [#allocation7], 1024
    $region65: #{tpu_custom_call.1} parent=1 // pred_fallthru
      _
    // Predicated region
    $region66: #{tpu_custom_call.1} parent=1 // pred_check
      _
    $region67: #{tpu_custom_call.1} parent=1 // pred_check_branch
      %1106 = sbr.rel (0) target = $region69
    $region68: #{tpu_custom_call.1} parent=1 // pred_region
      %1107 = dma.done [#allocation15], 1024
    $region69: #{tpu_custom_call.1} parent=1 // pred_fallthru
      _
    %1108 = vsyncpa [#allocation6], 1
    %1109 = vsyncpa [#allocation9], 1
    %1110 = vsyncpa [#allocation12], 1
    %1111 = vsyncpa [#allocation7], 1
    %1112 = vsyncpa [#allocation15], 1

</llo_original>
